<compile_context>
chip_gen: v7x
topology: tpu7x:2x2x1
jax: 0.10.0
libtpu: 0.0.40
codegen_flags: <defaults>
</compile_context>

<pallas_src>
import functools
import math

import jax
import jax.numpy as jnp
from jax import lax
from jax.experimental import pallas as pl
from jax.experimental.pallas import tpu as pltpu


def _sparse_attention_kernel(x_ref, w_ref, b_ref, ctx_ref, attn_ref, *,
                             num_heads, head_dim, top_k, mxu_dtype):
    """One grid step == one batch element; all heads handled in-kernel."""
    hd = head_dim
    H = num_heads * hd
    xb = x_ref[0]                                                  # (S, H) f32

    # Single wide QKV projection for ALL heads: one MXU matmul per batch step.
    qkv = jnp.dot(xb, w_ref[...],
                  preferred_element_type=jnp.float32) + b_ref[...]  # (S, 3H)

    scale = jnp.float32(1.0 / math.sqrt(hd))
    # Fold 1/sqrt(head_dim) into Q (S*H multiplies instead of nh*S*S).
    # The three H-wide segments start at lane multiples of 128 (H = 128).
    q_all = (qkv[:, 0 * H:1 * H] * scale).astype(mxu_dtype)
    k_all = qkv[:, 1 * H:2 * H].astype(mxu_dtype)
    v_all = qkv[:, 2 * H:3 * H].astype(mxu_dtype)

    neg_big = jnp.float32(-1e9)
    ctx_parts = []
    for h in range(num_heads):        # static unroll over heads
        # NOTE: with head_dim=32 < 128 the per-head lane slices are not
        # 128-aligned; padding head_dim to 128 would 4x the MXU work, so the
        # cheap lane shuffle here is accepted.
        sl = slice(h * hd, (h + 1) * hd)
        q, k, v = q_all[:, sl], k_all[:, sl], v_all[:, sl]

        # scores = (Q / sqrt(hd)) @ K^T — bf16 operands, f32 accumulation.
        scores = lax.dot_general(q, k, (((1,), (1,)), ((), ())),
                                 preferred_element_type=jnp.float32)  # (S, S)

        row_max = jnp.max(scores, axis=-1, keepdims=True)
        if top_k > 0:
            # Threshold search: find the k-th largest score per row with k-1
            # masked-max passes; the first pass's row max is reused as the
            # softmax max below (the max always survives the >= thresh select),
            # saving one full (S, S) cross-lane reduce per head.
            # (Exact float ties at the threshold keep all tied entries —
            # measure-zero on real activations, same caveat as torch.topk.)
            if top_k == 1:
                thresh = row_max
            else:
                working = jnp.where(scores >= row_max, neg_big, scores)
                for _ in range(top_k - 2):
                    wmax = jnp.max(working, axis=-1, keepdims=True)
                    working = jnp.where(working >= wmax, neg_big, working)
                thresh = jnp.max(working, axis=-1, keepdims=True)   # k-th largest
            scores = jnp.where(scores >= thresh, scores, neg_big)

        # Softmax over the last dim, in f32.  EUP reciprocal (approx) instead
        # of a VPU divide over the (S, S) tile; ~1e-3 relative vs exact softmax.
        e = jnp.exp(scores - row_max)
        denom = jnp.sum(e, axis=-1, keepdims=True)
        attn = e * pl.reciprocal(denom, approx=True)

        # context_h = attn @ V_h — bf16 operands, f32 accumulation.
        ctx_parts.append(jnp.dot(attn.astype(mxu_dtype), v,
                                 preferred_element_type=jnp.float32))
        attn_ref[0, h] = attn.astype(attn_ref.dtype)

    # One lane-dense (S, H) store (H = 128 lanes) for the whole batch element,
    # already in torch's context.transpose(1,2).contiguous().view(B,S,H) layout.
    ctx_ref[0] = jnp.concatenate(ctx_parts, axis=-1).astype(ctx_ref.dtype)


def fuse_qkv_params(wq, bq, wk, bk, wv, bv):
    """Pack Q/K/V projections into one (H, 3H) weight + (1, 3H) bias.

    Call ONCE at parameter-load time (hoisted out of the per-forward path).
    Weights are stored pre-transposed as (in_features, out_features).
    """
    w_all = jnp.concatenate([wq, wk, wv], axis=1)        # (H, 3H)
    b_all = jnp.concatenate([bq, bk, bv])[None, :]       # (1, 3H)
    return w_all, b_all


def sparse_attention(x, w_all, b_all, num_heads=4, *,
                     mxu_dtype=jnp.bfloat16, attn_dtype=jnp.bfloat16):
    """SparseAttention forward (eval mode).

    Returns (context (B, S, H) in x.dtype, attention_weights (B, nh, S, S) in
    attn_dtype), matching the PyTorch module's forward.  Pass
    mxu_dtype=attn_dtype=jnp.float32 for closest f32 parity with torch.
    """
    B, S, H = x.shape
    assert H % num_heads == 0, "hidden size must be divisible by num_heads"
    assert w_all.shape == (H, 3 * H) and b_all.shape == (1, 3 * H)
    head_dim = H // num_heads
    top_k = min(S // 2, 10)

    kernel = functools.partial(
        _sparse_attention_kernel,
        num_heads=num_heads, head_dim=head_dim, top_k=top_k, mxu_dtype=mxu_dtype)

    attn_bytes = jnp.dtype(attn_dtype).itemsize
    mxu_bytes = jnp.dtype(mxu_dtype).itemsize
    # Per-stage footprint: blocks + dominant in-kernel temporaries.
    block_bytes = (
        4 * (S * H + H * 3 * H + 3 * H + S * 3 * H + S * H)    # blocks + qkv
        + 3 * S * H * mxu_bytes                                 # q/k/v casts
        + 3 * S * S * 4                                         # scores/working/e
        + num_heads * S * S * attn_bytes)                       # attn out block
    try:
        vmem_cap = pltpu.get_tpu_info().vmem_capacity_bytes
    except Exception:
        vmem_cap = 64 << 20          # stay v7x-safe if the query is unavailable
    vmem_limit = int(min(max(2 * block_bytes + (16 << 20), 32 << 20),
                         int(0.75 * vmem_cap)))

    cost = pl.CostEstimate(
        flops=int(B * (2 * S * H * 3 * H + 4 * S * S * H)),
        transcendentals=int(B * num_heads * (S * S + S)),
        bytes_accessed=int(B * (8 * S * H + num_heads * S * S * attn_bytes)
                           + 4 * (H * 3 * H + 3 * H)),
    )

    ctx, attn = pl.pallas_call(
        kernel,
        out_shape=(
            jax.ShapeDtypeStruct((B, S, H), x.dtype),
            jax.ShapeDtypeStruct((B, num_heads, S, S), attn_dtype),
        ),
        grid=(B,),
        in_specs=[
            pl.BlockSpec((1, S, H), lambda b: (b, 0, 0)),
            # Constant block index -> fused weights/bias are fetched once and
            # stay resident across batch steps (no per-step re-DMA).
            pl.BlockSpec((H, 3 * H), lambda b: (0, 0)),
            pl.BlockSpec((1, 3 * H), lambda b: (0, 0)),
        ],
        out_specs=(
            pl.BlockSpec((1, S, H), lambda b: (b, 0, 0)),
            pl.BlockSpec((1, num_heads, S, S), lambda b: (b, 0, 0, 0)),
        ),
        compiler_params=pltpu.CompilerParams(
            dimension_semantics=("parallel",),
            vmem_limit_bytes=vmem_limit),
        cost_estimate=cost,
    )(x, w_all, b_all)
    return ctx, attn


def reference_sparse_attention(x, wq, bq, wk, bk, wv, bv, num_heads=4,
                               mxu_dtype=jnp.bfloat16):
    """Pure-JAX reference mirroring the PyTorch forward (eval mode).

    The MXU operand rounding (bf16 operands, f32 accumulation) is mirrored so
    the comparison with the kernel is apples-to-apples.
    """
    B, S, H = x.shape
    hd = H // num_heads
    scale = jnp.float32(1.0 / math.sqrt(hd))

    def proj(w, b):
        y = x @ w + b
        return y.reshape(B, S, num_heads, hd).transpose(0, 2, 1, 3)   # (B,nh,S,hd)

    Q, K, V = proj(wq, bq), proj(wk, bk), proj(wv, bv)
    scores = jnp.einsum('bhqd,bhkd->bhqk',
                        (Q * scale).astype(mxu_dtype), K.astype(mxu_dtype),
                        preferred_element_type=jnp.float32)
    top_k = min(S // 2, 10)
    if top_k > 0:
        _, idx = jax.lax.top_k(scores, top_k)
        mask = jnp.minimum(
            jnp.sum(jax.nn.one_hot(idx, S, dtype=scores.dtype), axis=-2), 1.0)
        scores = scores * mask + (1.0 - mask) * jnp.float32(-1e9)
    attn = jax.nn.softmax(scores, axis=-1)
    ctx = jnp.einsum('bhqk,bhkd->bhqd',
                     attn.astype(mxu_dtype), V.astype(mxu_dtype),
                     preferred_element_type=jnp.float32)
    ctx = ctx.transpose(0, 2, 1, 3).reshape(B, S, H)
    return ctx, attn


if __name__ == "__main__":
    # SBiLSTM's SparseAttention runs on hidden_size*2 = 128 features with
    # num_heads=4 (head_dim=32); batch=2, seq=8 for the demo.
    B, S, H = 2, 8, 128
    num_heads = 4

    key = jax.random.PRNGKey(0)
    kx, kq, kbq, kk, kbk, kv, kbv = jax.random.split(key, 7)

    x = jax.random.normal(kx, (B, S, H), dtype=jnp.float32)

    # nn.Linear-style deterministic init: U(-1/sqrt(H), 1/sqrt(H)), stored (in, out).
    bound = 1.0 / math.sqrt(H)
    wq = jax.random.uniform(kq, (H, H), jnp.float32, -bound, bound)
    bq = jax.random.uniform(kbq, (H,), jnp.float32, -bound, bound)
    wk = jax.random.uniform(kk, (H, H), jnp.float32, -bound, bound)
    bk = jax.random.uniform(kbk, (H,), jnp.float32, -bound, bound)
    wv = jax.random.uniform(kv, (H, H), jnp.float32, -bound, bound)
    bv = jax.random.uniform(kbv, (H,), jnp.float32, -bound, bound)

    # Fuse the QKV parameters ONCE (hoisted out of the per-forward path).
    w_all, b_all = fuse_qkv_params(wq, bq, wk, bk, wv, bv)

    ctx, attn = sparse_attention(x, w_all, b_all, num_heads=num_heads)
    jax.block_until_ready((ctx, attn))

    ctx_ref, attn_ref = reference_sparse_attention(x, wq, bq, wk, bk, wv, bv,
                                                   num_heads=num_heads)
    # Tolerance covers the approximate (EUP) reciprocal in the kernel's softmax
    # and the bf16 attention-map output; bf16 MXU operand rounding is mirrored
    # in the reference.
    assert jnp.allclose(ctx, ctx_ref, atol=1e-2, rtol=1e-2), "context mismatch"
    assert jnp.allclose(attn.astype(jnp.float32), attn_ref,
                        atol=1e-2, rtol=1e-2), "attention mismatch"

    print("KERNEL_OK")
</pallas_src>

<mosaic_0001>
module attributes {stable_mosaic.version = 11 : i64} {
  func.func @_sparse_attention_kernel(%arg0: i32, %arg1: memref<1x8x128xf32, #tpu.memory_space<vmem>>, %arg2: memref<128x384xf32, #tpu.memory_space<vmem>>, %arg3: memref<1x384xf32, #tpu.memory_space<vmem>>, %arg4: memref<1x8x128xf32, #tpu.memory_space<vmem>>, %arg5: memref<1x4x8x8xbf16, #tpu.memory_space<vmem>>) attributes {dimension_semantics = [#tpu.dimension_semantics<parallel>], iteration_bounds = array<i64: 2>, scalar_prefetch = 0 : i64, scratch_operands = 0 : i64, tpu.core_type = #tpu.core_type<tc>, window_params = [{transform_indices = @transform_0, window_bounds = array<i64: 1, 8, 128>}, {pipeline_mode = #tpu.pipeline_mode<synchronous>, transform_indices = @transform_1, window_bounds = array<i64: 128, 384>}, {pipeline_mode = #tpu.pipeline_mode<synchronous>, transform_indices = @transform_2, window_bounds = array<i64: 1, 384>}, {transform_indices = @transform_3, window_bounds = array<i64: 1, 8, 128>}, {transform_indices = @transform_4, window_bounds = array<i64: 1, 4, 8, 8>}]} {
    %c0 = arith.constant 0 : index
    %c0_0 = arith.constant 0 : index
    %c0_1 = arith.constant 0 : index
    %0 = vector.load %arg1[%c0, %c0_0, %c0_1] : memref<1x8x128xf32, #tpu.memory_space<vmem>>, vector<1x8x128xf32>
    %1 = vector.shape_cast %0 : vector<1x8x128xf32> to vector<8x128xf32>
    %c0_2 = arith.constant 0 : index
    %c0_3 = arith.constant 0 : index
    %2 = vector.load %arg2[%c0_2, %c0_3] : memref<128x384xf32, #tpu.memory_space<vmem>>, vector<128x384xf32>
    %cst = arith.constant dense<0.000000e+00> : vector<8x384xf32>
    %3 = tpu.matmul %1, %2, %cst {dimension_numbers = #tpu.dot_dimension_numbers<[1], [0], [0], [1], [0, 0, 1, 1], [], []>} : vector<8x128xf32>, vector<128x384xf32>, vector<8x384xf32> -> vector<8x384xf32>
    %c0_4 = arith.constant 0 : index
    %c0_5 = arith.constant 0 : index
    %4 = vector.load %arg3[%c0_4, %c0_5] : memref<1x384xf32, #tpu.memory_space<vmem>>, vector<1x384xf32>
    %5 = vector.broadcast %4 : vector<1x384xf32> to vector<8x384xf32>
    %6 = arith.addf %3, %5 : vector<8x384xf32>
    %7 = vector.extract_strided_slice %6 {offsets = [0, 0], sizes = [8, 128], strides = [1, 1]} : vector<8x384xf32> to vector<8x128xf32>
    %cst_6 = arith.constant 0.176776692 : f32
    %8 = vector.broadcast %cst_6 : f32 to vector<8x128xf32>
    %9 = arith.mulf %7, %8 : vector<8x128xf32>
    %10 = arith.truncf %9 : vector<8x128xf32> to vector<8x128xbf16>
    %11 = vector.extract_strided_slice %6 {offsets = [0, 128], sizes = [8, 128], strides = [1, 1]} : vector<8x384xf32> to vector<8x128xf32>
    %12 = arith.truncf %11 : vector<8x128xf32> to vector<8x128xbf16>
    %13 = vector.extract_strided_slice %6 {offsets = [0, 256], sizes = [8, 128], strides = [1, 1]} : vector<8x384xf32> to vector<8x128xf32>
    %14 = arith.truncf %13 : vector<8x128xf32> to vector<8x128xbf16>
    %15 = vector.extract_strided_slice %10 {offsets = [0, 0], sizes = [8, 32], strides = [1, 1]} : vector<8x128xbf16> to vector<8x32xbf16>
    %16 = vector.extract_strided_slice %12 {offsets = [0, 0], sizes = [8, 32], strides = [1, 1]} : vector<8x128xbf16> to vector<8x32xbf16>
    %17 = vector.extract_strided_slice %14 {offsets = [0, 0], sizes = [8, 32], strides = [1, 1]} : vector<8x128xbf16> to vector<8x32xbf16>
    %cst_7 = arith.constant dense<0.000000e+00> : vector<8x8xf32>
    %18 = tpu.matmul %15, %16, %cst_7 {dimension_numbers = #tpu.dot_dimension_numbers<[1], [1], [0], [0], [0, 0, 1, 0], [], []>} : vector<8x32xbf16>, vector<8x32xbf16>, vector<8x8xf32> -> vector<8x8xf32>
    %cst_8 = arith.constant dense<0xFF800000> : vector<8xf32>
    %19 = vector.multi_reduction <maximumf>, %18, %cst_8 [1] : vector<8x8xf32> to vector<8xf32>
    %20 = vector.shape_cast %19 : vector<8xf32> to vector<8x1xf32>
    %21 = vector.broadcast %20 : vector<8x1xf32> to vector<8x8xf32>
    %22 = arith.cmpf oge, %18, %21 : vector<8x8xf32>
    %cst_9 = arith.constant -1.000000e+09 : f32
    %23 = vector.broadcast %cst_9 : f32 to vector<8x8xf32>
    %24 = arith.select %22, %23, %18 : vector<8x8xi1>, vector<8x8xf32>
    %cst_10 = arith.constant dense<0xFF800000> : vector<8xf32>
    %25 = vector.multi_reduction <maximumf>, %24, %cst_10 [1] : vector<8x8xf32> to vector<8xf32>
    %26 = vector.shape_cast %25 : vector<8xf32> to vector<8x1xf32>
    %27 = vector.broadcast %26 : vector<8x1xf32> to vector<8x8xf32>
    %28 = arith.cmpf oge, %24, %27 : vector<8x8xf32>
    %cst_11 = arith.constant -1.000000e+09 : f32
    %29 = vector.broadcast %cst_11 : f32 to vector<8x8xf32>
    %30 = arith.select %28, %29, %24 : vector<8x8xi1>, vector<8x8xf32>
    %cst_12 = arith.constant dense<0xFF800000> : vector<8xf32>
    %31 = vector.multi_reduction <maximumf>, %30, %cst_12 [1] : vector<8x8xf32> to vector<8xf32>
    %32 = vector.shape_cast %31 : vector<8xf32> to vector<8x1xf32>
    %33 = vector.broadcast %32 : vector<8x1xf32> to vector<8x8xf32>
    %34 = arith.cmpf oge, %30, %33 : vector<8x8xf32>
    %cst_13 = arith.constant -1.000000e+09 : f32
    %35 = vector.broadcast %cst_13 : f32 to vector<8x8xf32>
    %36 = arith.select %34, %35, %30 : vector<8x8xi1>, vector<8x8xf32>
    %cst_14 = arith.constant dense<0xFF800000> : vector<8xf32>
    %37 = vector.multi_reduction <maximumf>, %36, %cst_14 [1] : vector<8x8xf32> to vector<8xf32>
    %38 = vector.shape_cast %37 : vector<8xf32> to vector<8x1xf32>
    %39 = vector.broadcast %38 : vector<8x1xf32> to vector<8x8xf32>
    %40 = arith.cmpf oge, %18, %39 : vector<8x8xf32>
    %cst_15 = arith.constant -1.000000e+09 : f32
    %41 = vector.broadcast %cst_15 : f32 to vector<8x8xf32>
    %42 = arith.select %40, %18, %41 : vector<8x8xi1>, vector<8x8xf32>
    %43 = vector.broadcast %20 : vector<8x1xf32> to vector<8x8xf32>
    %44 = arith.subf %42, %43 : vector<8x8xf32>
    %45 = math.exp %44 : vector<8x8xf32>
    %cst_16 = arith.constant dense<0.000000e+00> : vector<8xf32>
    %46 = vector.multi_reduction <add>, %45, %cst_16 [1] : vector<8x8xf32> to vector<8xf32>
    %47 = vector.shape_cast %46 : vector<8xf32> to vector<8x1xf32>
    %48 = tpu.reciprocal %47 {approx = true} : vector<8x1xf32> -> vector<8x1xf32>
    %49 = vector.broadcast %48 : vector<8x1xf32> to vector<8x8xf32>
    %50 = arith.mulf %45, %49 : vector<8x8xf32>
    %51 = arith.truncf %50 : vector<8x8xf32> to vector<8x8xbf16>
    %cst_17 = arith.constant dense<0.000000e+00> : vector<8x32xf32>
    %52 = tpu.matmul %51, %17, %cst_17 {dimension_numbers = #tpu.dot_dimension_numbers<[1], [0], [0], [1], [0, 0, 1, 1], [], []>} : vector<8x8xbf16>, vector<8x32xbf16>, vector<8x32xf32> -> vector<8x32xf32>
    %53 = arith.truncf %50 : vector<8x8xf32> to vector<8x8xbf16>
    %c0_18 = arith.constant 0 : index
    %c0_19 = arith.constant 0 : index
    %c0_20 = arith.constant 0 : index
    %c0_21 = arith.constant 0 : index
    %54 = vector.load %arg5[%c0_18, %c0_19, %c0_20, %c0_21] : memref<1x4x8x8xbf16, #tpu.memory_space<vmem>>, vector<1x1x8x8xbf16>
    %55 = vector.shape_cast %54 : vector<1x1x8x8xbf16> to vector<8x8xbf16>
    %56 = vector.shape_cast %53 : vector<8x8xbf16> to vector<1x1x8x8xbf16>
    tpu.vector_store %arg5[%c0_18, %c0_19, %c0_20, %c0_21], %56 {strides = array<i32>} : memref<1x4x8x8xbf16, #tpu.memory_space<vmem>>, vector<1x1x8x8xbf16>,
    %57 = vector.extract_strided_slice %10 {offsets = [0, 32], sizes = [8, 32], strides = [1, 1]} : vector<8x128xbf16> to vector<8x32xbf16>
    %58 = vector.extract_strided_slice %12 {offsets = [0, 32], sizes = [8, 32], strides = [1, 1]} : vector<8x128xbf16> to vector<8x32xbf16>
    %59 = vector.extract_strided_slice %14 {offsets = [0, 32], sizes = [8, 32], strides = [1, 1]} : vector<8x128xbf16> to vector<8x32xbf16>
    %cst_22 = arith.constant dense<0.000000e+00> : vector<8x8xf32>
    %60 = tpu.matmul %57, %58, %cst_22 {dimension_numbers = #tpu.dot_dimension_numbers<[1], [1], [0], [0], [0, 0, 1, 0], [], []>} : vector<8x32xbf16>, vector<8x32xbf16>, vector<8x8xf32> -> vector<8x8xf32>
    %cst_23 = arith.constant dense<0xFF800000> : vector<8xf32>
    %61 = vector.multi_reduction <maximumf>, %60, %cst_23 [1] : vector<8x8xf32> to vector<8xf32>
    %62 = vector.shape_cast %61 : vector<8xf32> to vector<8x1xf32>
    %63 = vector.broadcast %62 : vector<8x1xf32> to vector<8x8xf32>
    %64 = arith.cmpf oge, %60, %63 : vector<8x8xf32>
    %cst_24 = arith.constant -1.000000e+09 : f32
    %65 = vector.broadcast %cst_24 : f32 to vector<8x8xf32>
    %66 = arith.select %64, %65, %60 : vector<8x8xi1>, vector<8x8xf32>
    %cst_25 = arith.constant dense<0xFF800000> : vector<8xf32>
    %67 = vector.multi_reduction <maximumf>, %66, %cst_25 [1] : vector<8x8xf32> to vector<8xf32>
    %68 = vector.shape_cast %67 : vector<8xf32> to vector<8x1xf32>
    %69 = vector.broadcast %68 : vector<8x1xf32> to vector<8x8xf32>
    %70 = arith.cmpf oge, %66, %69 : vector<8x8xf32>
    %cst_26 = arith.constant -1.000000e+09 : f32
    %71 = vector.broadcast %cst_26 : f32 to vector<8x8xf32>
    %72 = arith.select %70, %71, %66 : vector<8x8xi1>, vector<8x8xf32>
    %cst_27 = arith.constant dense<0xFF800000> : vector<8xf32>
    %73 = vector.multi_reduction <maximumf>, %72, %cst_27 [1] : vector<8x8xf32> to vector<8xf32>
    %74 = vector.shape_cast %73 : vector<8xf32> to vector<8x1xf32>
    %75 = vector.broadcast %74 : vector<8x1xf32> to vector<8x8xf32>
    %76 = arith.cmpf oge, %72, %75 : vector<8x8xf32>
    %cst_28 = arith.constant -1.000000e+09 : f32
    %77 = vector.broadcast %cst_28 : f32 to vector<8x8xf32>
    %78 = arith.select %76, %77, %72 : vector<8x8xi1>, vector<8x8xf32>
    %cst_29 = arith.constant dense<0xFF800000> : vector<8xf32>
    %79 = vector.multi_reduction <maximumf>, %78, %cst_29 [1] : vector<8x8xf32> to vector<8xf32>
    %80 = vector.shape_cast %79 : vector<8xf32> to vector<8x1xf32>
    %81 = vector.broadcast %80 : vector<8x1xf32> to vector<8x8xf32>
    %82 = arith.cmpf oge, %60, %81 : vector<8x8xf32>
    %cst_30 = arith.constant -1.000000e+09 : f32
    %83 = vector.broadcast %cst_30 : f32 to vector<8x8xf32>
    %84 = arith.select %82, %60, %83 : vector<8x8xi1>, vector<8x8xf32>
    %85 = vector.broadcast %62 : vector<8x1xf32> to vector<8x8xf32>
    %86 = arith.subf %84, %85 : vector<8x8xf32>
    %87 = math.exp %86 : vector<8x8xf32>
    %cst_31 = arith.constant dense<0.000000e+00> : vector<8xf32>
    %88 = vector.multi_reduction <add>, %87, %cst_31 [1] : vector<8x8xf32> to vector<8xf32>
    %89 = vector.shape_cast %88 : vector<8xf32> to vector<8x1xf32>
    %90 = tpu.reciprocal %89 {approx = true} : vector<8x1xf32> -> vector<8x1xf32>
    %91 = vector.broadcast %90 : vector<8x1xf32> to vector<8x8xf32>
    %92 = arith.mulf %87, %91 : vector<8x8xf32>
    %93 = arith.truncf %92 : vector<8x8xf32> to vector<8x8xbf16>
    %cst_32 = arith.constant dense<0.000000e+00> : vector<8x32xf32>
    %94 = tpu.matmul %93, %59, %cst_32 {dimension_numbers = #tpu.dot_dimension_numbers<[1], [0], [0], [1], [0, 0, 1, 1], [], []>} : vector<8x8xbf16>, vector<8x32xbf16>, vector<8x32xf32> -> vector<8x32xf32>
    %95 = arith.truncf %92 : vector<8x8xf32> to vector<8x8xbf16>
    %c0_33 = arith.constant 0 : index
    %c1 = arith.constant 1 : index
    %c0_34 = arith.constant 0 : index
    %c0_35 = arith.constant 0 : index
    %96 = vector.load %arg5[%c0_33, %c1, %c0_34, %c0_35] : memref<1x4x8x8xbf16, #tpu.memory_space<vmem>>, vector<1x1x8x8xbf16>
    %97 = vector.shape_cast %96 : vector<1x1x8x8xbf16> to vector<8x8xbf16>
    %98 = vector.shape_cast %95 : vector<8x8xbf16> to vector<1x1x8x8xbf16>
    tpu.vector_store %arg5[%c0_33, %c1, %c0_34, %c0_35], %98 {strides = array<i32>} : memref<1x4x8x8xbf16, #tpu.memory_space<vmem>>, vector<1x1x8x8xbf16>,
    %99 = vector.extract_strided_slice %10 {offsets = [0, 64], sizes = [8, 32], strides = [1, 1]} : vector<8x128xbf16> to vector<8x32xbf16>
    %100 = vector.extract_strided_slice %12 {offsets = [0, 64], sizes = [8, 32], strides = [1, 1]} : vector<8x128xbf16> to vector<8x32xbf16>
    %101 = vector.extract_strided_slice %14 {offsets = [0, 64], sizes = [8, 32], strides = [1, 1]} : vector<8x128xbf16> to vector<8x32xbf16>
    %cst_36 = arith.constant dense<0.000000e+00> : vector<8x8xf32>
    %102 = tpu.matmul %99, %100, %cst_36 {dimension_numbers = #tpu.dot_dimension_numbers<[1], [1], [0], [0], [0, 0, 1, 0], [], []>} : vector<8x32xbf16>, vector<8x32xbf16>, vector<8x8xf32> -> vector<8x8xf32>
    %cst_37 = arith.constant dense<0xFF800000> : vector<8xf32>
    %103 = vector.multi_reduction <maximumf>, %102, %cst_37 [1] : vector<8x8xf32> to vector<8xf32>
    %104 = vector.shape_cast %103 : vector<8xf32> to vector<8x1xf32>
    %105 = vector.broadcast %104 : vector<8x1xf32> to vector<8x8xf32>
    %106 = arith.cmpf oge, %102, %105 : vector<8x8xf32>
    %cst_38 = arith.constant -1.000000e+09 : f32
    %107 = vector.broadcast %cst_38 : f32 to vector<8x8xf32>
    %108 = arith.select %106, %107, %102 : vector<8x8xi1>, vector<8x8xf32>
    %cst_39 = arith.constant dense<0xFF800000> : vector<8xf32>
    %109 = vector.multi_reduction <maximumf>, %108, %cst_39 [1] : vector<8x8xf32> to vector<8xf32>
    %110 = vector.shape_cast %109 : vector<8xf32> to vector<8x1xf32>
    %111 = vector.broadcast %110 : vector<8x1xf32> to vector<8x8xf32>
    %112 = arith.cmpf oge, %108, %111 : vector<8x8xf32>
    %cst_40 = arith.constant -1.000000e+09 : f32
    %113 = vector.broadcast %cst_40 : f32 to vector<8x8xf32>
    %114 = arith.select %112, %113, %108 : vector<8x8xi1>, vector<8x8xf32>
    %cst_41 = arith.constant dense<0xFF800000> : vector<8xf32>
    %115 = vector.multi_reduction <maximumf>, %114, %cst_41 [1] : vector<8x8xf32> to vector<8xf32>
    %116 = vector.shape_cast %115 : vector<8xf32> to vector<8x1xf32>
    %117 = vector.broadcast %116 : vector<8x1xf32> to vector<8x8xf32>
    %118 = arith.cmpf oge, %114, %117 : vector<8x8xf32>
    %cst_42 = arith.constant -1.000000e+09 : f32
    %119 = vector.broadcast %cst_42 : f32 to vector<8x8xf32>
    %120 = arith.select %118, %119, %114 : vector<8x8xi1>, vector<8x8xf32>
    %cst_43 = arith.constant dense<0xFF800000> : vector<8xf32>
    %121 = vector.multi_reduction <maximumf>, %120, %cst_43 [1] : vector<8x8xf32> to vector<8xf32>
    %122 = vector.shape_cast %121 : vector<8xf32> to vector<8x1xf32>
    %123 = vector.broadcast %122 : vector<8x1xf32> to vector<8x8xf32>
    %124 = arith.cmpf oge, %102, %123 : vector<8x8xf32>
    %cst_44 = arith.constant -1.000000e+09 : f32
    %125 = vector.broadcast %cst_44 : f32 to vector<8x8xf32>
    %126 = arith.select %124, %102, %125 : vector<8x8xi1>, vector<8x8xf32>
    %127 = vector.broadcast %104 : vector<8x1xf32> to vector<8x8xf32>
    %128 = arith.subf %126, %127 : vector<8x8xf32>
    %129 = math.exp %128 : vector<8x8xf32>
    %cst_45 = arith.constant dense<0.000000e+00> : vector<8xf32>
    %130 = vector.multi_reduction <add>, %129, %cst_45 [1] : vector<8x8xf32> to vector<8xf32>
    %131 = vector.shape_cast %130 : vector<8xf32> to vector<8x1xf32>
    %132 = tpu.reciprocal %131 {approx = true} : vector<8x1xf32> -> vector<8x1xf32>
    %133 = vector.broadcast %132 : vector<8x1xf32> to vector<8x8xf32>
    %134 = arith.mulf %129, %133 : vector<8x8xf32>
    %135 = arith.truncf %134 : vector<8x8xf32> to vector<8x8xbf16>
    %cst_46 = arith.constant dense<0.000000e+00> : vector<8x32xf32>
    %136 = tpu.matmul %135, %101, %cst_46 {dimension_numbers = #tpu.dot_dimension_numbers<[1], [0], [0], [1], [0, 0, 1, 1], [], []>} : vector<8x8xbf16>, vector<8x32xbf16>, vector<8x32xf32> -> vector<8x32xf32>
    %137 = arith.truncf %134 : vector<8x8xf32> to vector<8x8xbf16>
    %c0_47 = arith.constant 0 : index
    %c2 = arith.constant 2 : index
    %c0_48 = arith.constant 0 : index
    %c0_49 = arith.constant 0 : index
    %138 = vector.load %arg5[%c0_47, %c2, %c0_48, %c0_49] : memref<1x4x8x8xbf16, #tpu.memory_space<vmem>>, vector<1x1x8x8xbf16>
    %139 = vector.shape_cast %138 : vector<1x1x8x8xbf16> to vector<8x8xbf16>
    %140 = vector.shape_cast %137 : vector<8x8xbf16> to vector<1x1x8x8xbf16>
    tpu.vector_store %arg5[%c0_47, %c2, %c0_48, %c0_49], %140 {strides = array<i32>} : memref<1x4x8x8xbf16, #tpu.memory_space<vmem>>, vector<1x1x8x8xbf16>,
    %141 = vector.extract_strided_slice %10 {offsets = [0, 96], sizes = [8, 32], strides = [1, 1]} : vector<8x128xbf16> to vector<8x32xbf16>
    %142 = vector.extract_strided_slice %12 {offsets = [0, 96], sizes = [8, 32], strides = [1, 1]} : vector<8x128xbf16> to vector<8x32xbf16>
    %143 = vector.extract_strided_slice %14 {offsets = [0, 96], sizes = [8, 32], strides = [1, 1]} : vector<8x128xbf16> to vector<8x32xbf16>
    %cst_50 = arith.constant dense<0.000000e+00> : vector<8x8xf32>
    %144 = tpu.matmul %141, %142, %cst_50 {dimension_numbers = #tpu.dot_dimension_numbers<[1], [1], [0], [0], [0, 0, 1, 0], [], []>} : vector<8x32xbf16>, vector<8x32xbf16>, vector<8x8xf32> -> vector<8x8xf32>
    %cst_51 = arith.constant dense<0xFF800000> : vector<8xf32>
    %145 = vector.multi_reduction <maximumf>, %144, %cst_51 [1] : vector<8x8xf32> to vector<8xf32>
    %146 = vector.shape_cast %145 : vector<8xf32> to vector<8x1xf32>
    %147 = vector.broadcast %146 : vector<8x1xf32> to vector<8x8xf32>
    %148 = arith.cmpf oge, %144, %147 : vector<8x8xf32>
    %cst_52 = arith.constant -1.000000e+09 : f32
    %149 = vector.broadcast %cst_52 : f32 to vector<8x8xf32>
    %150 = arith.select %148, %149, %144 : vector<8x8xi1>, vector<8x8xf32>
    %cst_53 = arith.constant dense<0xFF800000> : vector<8xf32>
    %151 = vector.multi_reduction <maximumf>, %150, %cst_53 [1] : vector<8x8xf32> to vector<8xf32>
    %152 = vector.shape_cast %151 : vector<8xf32> to vector<8x1xf32>
    %153 = vector.broadcast %152 : vector<8x1xf32> to vector<8x8xf32>
    %154 = arith.cmpf oge, %150, %153 : vector<8x8xf32>
    %cst_54 = arith.constant -1.000000e+09 : f32
    %155 = vector.broadcast %cst_54 : f32 to vector<8x8xf32>
    %156 = arith.select %154, %155, %150 : vector<8x8xi1>, vector<8x8xf32>
    %cst_55 = arith.constant dense<0xFF800000> : vector<8xf32>
    %157 = vector.multi_reduction <maximumf>, %156, %cst_55 [1] : vector<8x8xf32> to vector<8xf32>
    %158 = vector.shape_cast %157 : vector<8xf32> to vector<8x1xf32>
    %159 = vector.broadcast %158 : vector<8x1xf32> to vector<8x8xf32>
    %160 = arith.cmpf oge, %156, %159 : vector<8x8xf32>
    %cst_56 = arith.constant -1.000000e+09 : f32
    %161 = vector.broadcast %cst_56 : f32 to vector<8x8xf32>
    %162 = arith.select %160, %161, %156 : vector<8x8xi1>, vector<8x8xf32>
    %cst_57 = arith.constant dense<0xFF800000> : vector<8xf32>
    %163 = vector.multi_reduction <maximumf>, %162, %cst_57 [1] : vector<8x8xf32> to vector<8xf32>
    %164 = vector.shape_cast %163 : vector<8xf32> to vector<8x1xf32>
    %165 = vector.broadcast %164 : vector<8x1xf32> to vector<8x8xf32>
    %166 = arith.cmpf oge, %144, %165 : vector<8x8xf32>
    %cst_58 = arith.constant -1.000000e+09 : f32
    %167 = vector.broadcast %cst_58 : f32 to vector<8x8xf32>
    %168 = arith.select %166, %144, %167 : vector<8x8xi1>, vector<8x8xf32>
    %169 = vector.broadcast %146 : vector<8x1xf32> to vector<8x8xf32>
    %170 = arith.subf %168, %169 : vector<8x8xf32>
    %171 = math.exp %170 : vector<8x8xf32>
    %cst_59 = arith.constant dense<0.000000e+00> : vector<8xf32>
    %172 = vector.multi_reduction <add>, %171, %cst_59 [1] : vector<8x8xf32> to vector<8xf32>
    %173 = vector.shape_cast %172 : vector<8xf32> to vector<8x1xf32>
    %174 = tpu.reciprocal %173 {approx = true} : vector<8x1xf32> -> vector<8x1xf32>
    %175 = vector.broadcast %174 : vector<8x1xf32> to vector<8x8xf32>
    %176 = arith.mulf %171, %175 : vector<8x8xf32>
    %177 = arith.truncf %176 : vector<8x8xf32> to vector<8x8xbf16>
    %cst_60 = arith.constant dense<0.000000e+00> : vector<8x32xf32>
    %178 = tpu.matmul %177, %143, %cst_60 {dimension_numbers = #tpu.dot_dimension_numbers<[1], [0], [0], [1], [0, 0, 1, 1], [], []>} : vector<8x8xbf16>, vector<8x32xbf16>, vector<8x32xf32> -> vector<8x32xf32>
    %179 = arith.truncf %176 : vector<8x8xf32> to vector<8x8xbf16>
    %c0_61 = arith.constant 0 : index
    %c3 = arith.constant 3 : index
    %c0_62 = arith.constant 0 : index
    %c0_63 = arith.constant 0 : index
    %180 = vector.load %arg5[%c0_61, %c3, %c0_62, %c0_63] : memref<1x4x8x8xbf16, #tpu.memory_space<vmem>>, vector<1x1x8x8xbf16>
    %181 = vector.shape_cast %180 : vector<1x1x8x8xbf16> to vector<8x8xbf16>
    %182 = vector.shape_cast %179 : vector<8x8xbf16> to vector<1x1x8x8xbf16>
    tpu.vector_store %arg5[%c0_61, %c3, %c0_62, %c0_63], %182 {strides = array<i32>} : memref<1x4x8x8xbf16, #tpu.memory_space<vmem>>, vector<1x1x8x8xbf16>,
    %183 = tpu.concatenate %52, %94, %136, %178 in 1 : vector<8x32xf32>, vector<8x32xf32>, vector<8x32xf32>, vector<8x32xf32> -> vector<8x128xf32>
    %c0_64 = arith.constant 0 : index
    %c0_65 = arith.constant 0 : index
    %c0_66 = arith.constant 0 : index
    %184 = vector.load %arg4[%c0_64, %c0_65, %c0_66] : memref<1x8x128xf32, #tpu.memory_space<vmem>>, vector<1x8x128xf32>
    %185 = vector.shape_cast %184 : vector<1x8x128xf32> to vector<8x128xf32>
    %186 = vector.shape_cast %183 : vector<8x128xf32> to vector<1x8x128xf32>
    tpu.vector_store %arg4[%c0_64, %c0_65, %c0_66], %186 {strides = array<i32>} : memref<1x8x128xf32, #tpu.memory_space<vmem>>, vector<1x8x128xf32>,
    return
  }
  func.func @transform_0(%arg0: i32) -> (i32, i32, i32) {
    %c0_i32 = arith.constant 0 : i32
    %c0_i32_0 = arith.constant 0 : i32
    %c0_i32_1 = arith.constant 0 : i32
    return %arg0, %c0_i32, %c0_i32_0 : i32, i32, i32
  }
  func.func @transform_1(%arg0: i32) -> (i32, i32) {
    %c0_i32 = arith.constant 0 : i32
    %c0_i32_0 = arith.constant 0 : i32
    %c0_i32_1 = arith.constant 0 : i32
    return %c0_i32, %c0_i32_0 : i32, i32
  }
  func.func @transform_2(%arg0: i32) -> (i32, i32) {
    %c0_i32 = arith.constant 0 : i32
    %c0_i32_0 = arith.constant 0 : i32
    %c0_i32_1 = arith.constant 0 : i32
    return %c0_i32, %c0_i32_0 : i32, i32
  }
  func.func @transform_3(%arg0: i32) -> (i32, i32, i32) {
    %c0_i32 = arith.constant 0 : i32
    %c0_i32_0 = arith.constant 0 : i32
    %c0_i32_1 = arith.constant 0 : i32
    return %arg0, %c0_i32, %c0_i32_0 : i32, i32, i32
  }
  func.func @transform_4(%arg0: i32) -> (i32, i32, i32, i32) {
    %c0_i32 = arith.constant 0 : i32
    %c0_i32_0 = arith.constant 0 : i32
    %c0_i32_1 = arith.constant 0 : i32
    %c0_i32_2 = arith.constant 0 : i32
    return %arg0, %c0_i32, %c0_i32_0, %c0_i32_1 : i32, i32, i32, i32
  }
}

</mosaic_0001>

<llo_original>
// kernel: tpu_custom_call.1
$region0: #{tpu_custom_call.1}
  #allocation0 [shape = 'u32[]', space=smem, size = 0x4, offset = 0x4, fixed_abs, tag = 'smem constant byte address 0x4 - core index']
  #allocation1 [shape = 'u32[144,128]{1,0:T(1,128)}', space=vmem, size = 0x12000, scoped, tag = 'internal scratch']
  %s0 = inlined_call_operand.hbm [shape: f32[2,8,128], index: 0, kind: input, shape index: {}]
  %s1 = inlined_call_operand.hbm [shape: f32[128,384], index: 1, kind: input, shape index: {}]
  %s2 = inlined_call_operand.vmem [shape: f32[1,384], index: 2, kind: input, shape index: {}]
  %s3 = inlined_call_operand.hbm [shape: f32[2,8,128], index: 3, kind: output, shape index: {0}]
  %s4 = inlined_call_operand.hbm [shape: bf16[2,4,8,8], index: 4, kind: output, shape index: {1}]
  %5 = xla_tuple %s3, %s4
  %s6 = sld [smem:[#allocation0]]
  $region61: #{tpu_custom_call.1} parent=0
    _
  %s8 = ssub.s32 1, %s6
  %s9 = scalar_select 0, %s8, %s6
  $region1: #{tpu_custom_call.1} parent=0
    #allocation2 [shape = 'u8[8192]{0}', space=vmem, size = 0x2000, scoped, tag = 'input window, operand 0']
    #allocation3 [shape = 's32[2]{0}', space=sflag, size = 0x8, scoped, tag = 'scoped memory for tpu_custom_call.1']
    #allocation4 [shape = 's32[2]{0}', space=sflag, size = 0x8, scoped, tag = 'scoped memory for tpu_custom_call.1']
    #allocation5 [shape = 'u8[196608]{0}', space=vmem, size = 0x30000, scoped, tag = 'input window, operand 1, single buffered']
    #allocation6 [shape = 's32[1]{0}', space=sflag, size = 0x4, scoped, tag = 'scoped memory for tpu_custom_call.1']
    #allocation7 [shape = 'u8[8192]{0}', space=vmem, size = 0x2000, scoped, tag = 'output window, operand 0']
    #allocation8 [shape = 'u8[16384]{0}', space=vmem, size = 0x4000, scoped, tag = 'output window, operand 1']
    #allocation9 [shape = 's32[2]{0}', space=sflag, size = 0x8, scoped, tag = 'scoped memory for tpu_custom_call.1']
    %10 = vsyncpa [#allocation3], 0
    %s11 = scalar_lea.sflag [#allocation3], 1
    %12 = vsyncpa %s11, 0
    %13 = vsyncpa [#allocation6], 0
    %14 = vsyncpa [#allocation4], 0
    %s15 = scalar_lea.sflag [#allocation4], 1
    %16 = vsyncpa %s15, 0
    %17 = vsyncpa [#allocation9], 0
    %s18 = scalar_lea.sflag [#allocation9], 1
    %19 = vsyncpa %s18, 0
    loop: start=0, step=1, limit=4
    $region2: #{tpu_custom_call.1} parent=1 // loop_pre_header
      _
    $region3: #{tpu_custom_call.1} parent=1 // loop_header
      %s21 = sphi 0, %s25
      %p22 = scmp.ge.s32.totalorder %s21, 4
      %s31 = sphi 0, %s33
      %s34 = sphi 0, %s31
      %s35 = sphi 0, %s34
      %s51 = sphi 0, %s35
      %s55 = sphi 0, %s55
      %s57 = sphi 0, %s55
      %s58 = sphi 0, %s57
      %s72 = sphi 0, %s58
      %s76 = sphi 0, %s76
      %s78 = sphi 0, %s76
      %s79 = sphi 0, %s78
      %s93 = sphi 0, %s79
      %s99 = sphi 0, %s101
      %s102 = sphi 0, %s99
      %s103 = sphi 0, %s102
      %s119 = sphi 0, %s103
      %s125 = sphi 0, %s127
      %s128 = sphi 0, %s125
      %s129 = sphi 0, %s128
      %s145 = sphi 0, %s129
    $region4: #{tpu_custom_call.1} parent=1 // loop_header_branch
      %24 = sbr.rel (%p22) target = $region8
    $region5: #{tpu_custom_call.1} parent=1 // loop_body
      %s26 = ssub.s32 %s21, 1
      %s27 = ssub.s32 %s21, 2
      %s28 = sadd.s32 %s21, 1
      %s29 = ssub.s32 %s21, %s28
      %p30 = scmp.eq.s32.totalorder %s29, 0
      %s32 = sadd.s32 %s31, 1
      %s33 = scalar_select %p30, %s31, %s32
      %p36 = pneg %p30
      %p37 = scmp.eq.s32.totalorder %s21, 1
      %p38 = por %p36, %p37
      %p39 = scmp.ne.s32.totalorder %s31, %s34
      %p40 = scmp.eq.s32.totalorder %s21, 0
      %p41 = por %p39, %p40
      %p42 = scmp.ne.s32.totalorder %s31, %s34
      %p43 = scmp.eq.s32.totalorder %s26, 1
      %p44 = por %p42, %p43
      %p45 = scmp.ne.s32.totalorder %s34, %s35
      %p46 = scmp.eq.s32.totalorder %s26, 0
      %p47 = por %p45, %p46
      %p48 = scmp.ne.s32.totalorder %s34, %s35
      %p49 = scmp.eq.s32.totalorder %s27, 1
      %p50 = por %p48, %p49
      %p52 = scmp.ne.s32.totalorder %s35, %s51
      %p53 = scmp.eq.s32.totalorder %s27, 0
      %p54 = por %p52, %p53
      %s56 = sadd.s32 %s55, 1
      %p59 = scmp.eq.s32.totalorder %s21, 1
      %p60 = scmp.ne.s32.totalorder %s55, %s57
      %p61 = scmp.eq.s32.totalorder %s21, 0
      %p62 = por %p60, %p61
      %p63 = scmp.ne.s32.totalorder %s55, %s57
      %p64 = scmp.eq.s32.totalorder %s26, 1
      %p65 = por %p63, %p64
      %p66 = scmp.ne.s32.totalorder %s57, %s58
      %p67 = scmp.eq.s32.totalorder %s26, 0
      %p68 = por %p66, %p67
      %p69 = scmp.ne.s32.totalorder %s57, %s58
      %p70 = scmp.eq.s32.totalorder %s27, 1
      %p71 = por %p69, %p70
      %p73 = scmp.ne.s32.totalorder %s58, %s72
      %p74 = scmp.eq.s32.totalorder %s27, 0
      %p75 = por %p73, %p74
      %s77 = sadd.s32 %s76, 1
      %p80 = scmp.eq.s32.totalorder %s21, 1
      %p81 = scmp.ne.s32.totalorder %s76, %s78
      %p82 = scmp.eq.s32.totalorder %s21, 0
      %p83 = por %p81, %p82
      %p84 = scmp.ne.s32.totalorder %s76, %s78
      %p85 = scmp.eq.s32.totalorder %s26, 1
      %p86 = por %p84, %p85
      %p87 = scmp.ne.s32.totalorder %s78, %s79
      %p88 = scmp.eq.s32.totalorder %s26, 0
      %p89 = por %p87, %p88
      %p90 = scmp.ne.s32.totalorder %s78, %s79
      %p91 = scmp.eq.s32.totalorder %s27, 1
      %p92 = por %p90, %p91
      %p94 = scmp.ne.s32.totalorder %s79, %s93
      %p95 = scmp.eq.s32.totalorder %s27, 0
      %p96 = por %p94, %p95
      %s97 = ssub.s32 %s21, %s28
      %p98 = scmp.eq.s32.totalorder %s97, 0
      %s100 = sadd.s32 %s99, 1
      %s101 = scalar_select %p98, %s99, %s100
      %p104 = pneg %p98
      %p105 = scmp.eq.s32.totalorder %s21, 1
      %p106 = por %p104, %p105
      %p107 = scmp.ne.s32.totalorder %s99, %s102
      %p108 = scmp.eq.s32.totalorder %s21, 0
      %p109 = por %p107, %p108
      %p110 = scmp.ne.s32.totalorder %s99, %s102
      %p111 = scmp.eq.s32.totalorder %s26, 1
      %p112 = por %p110, %p111
      %p113 = scmp.ne.s32.totalorder %s102, %s103
      %p114 = scmp.eq.s32.totalorder %s26, 0
      %p115 = por %p113, %p114
      %p116 = scmp.ne.s32.totalorder %s102, %s103
      %p117 = scmp.eq.s32.totalorder %s27, 1
      %p118 = por %p116, %p117
      %p120 = scmp.ne.s32.totalorder %s103, %s119
      %p121 = scmp.eq.s32.totalorder %s27, 0
      %p122 = por %p120, %p121
      %s123 = ssub.s32 %s21, %s28
      %p124 = scmp.eq.s32.totalorder %s123, 0
      %s126 = sadd.s32 %s125, 1
      %s127 = scalar_select %p124, %s125, %s126
      %p130 = pneg %p124
      %p131 = scmp.eq.s32.totalorder %s21, 1
      %p132 = por %p130, %p131
      %p133 = scmp.ne.s32.totalorder %s125, %s128
      %p134 = scmp.eq.s32.totalorder %s21, 0
      %p135 = por %p133, %p134
      %p136 = scmp.ne.s32.totalorder %s125, %s128
      %p137 = scmp.eq.s32.totalorder %s26, 1
      %p138 = por %p136, %p137
      %p139 = scmp.ne.s32.totalorder %s128, %s129
      %p140 = scmp.eq.s32.totalorder %s26, 0
      %p141 = por %p139, %p140
      %p142 = scmp.ne.s32.totalorder %s128, %s129
      %p143 = scmp.eq.s32.totalorder %s27, 1
      %p144 = por %p142, %p143
      %p146 = scmp.ne.s32.totalorder %s129, %s145
      %p147 = scmp.eq.s32.totalorder %s27, 0
      %p148 = por %p146, %p147
      %p149 = scmp.le.s32.totalorder 1, %s21
      %p150 = scmp.lt.s32.totalorder %s21, 3
      %p151 = pnand %p149, %p150
      %p152 = pneg %p151
      // Predicated region
      $region9: #{tpu_custom_call.1} parent=5 // pred_check
        _
      $region10: #{tpu_custom_call.1} parent=5 // pred_check_branch
        %154 = sbr.rel (%p151) target = $region12
      $region11: #{tpu_custom_call.1} parent=5 // pred_region
        %s155 = ssub.s32 %s21, 1
        // Predicated region
        $region13: #{tpu_custom_call.1} parent=11 // pred_check
          %p156 = pneg %p68
        $region14: #{tpu_custom_call.1} parent=11 // pred_check_branch
          %158 = sbr.rel (%p156) target = $region16
        $region15: #{tpu_custom_call.1} parent=11 // pred_region
          %s160 = ssub.s32 6144, 6144
          %161 = vsyncadd [#allocation6], %s160
          %s162 = sshll.u32 [#allocation5], 4
          %s163 = int_to_ptr.vmem [resolvable:$true] %s162
          %168 = dma.hbm_to_vmem [thread:$0]  %s1, 6144, %s163, [#allocation6], 384, 384, 24
        $region16: #{tpu_custom_call.1} parent=11 // pred_fallthru
          _
        // Predicated region
        $region17: #{tpu_custom_call.1} parent=11 // pred_check
          %p169 = pneg %p89
        $region18: #{tpu_custom_call.1} parent=11 // pred_check_branch
          %171 = sbr.rel (%p169) target = $region20
        $region19: #{tpu_custom_call.1} parent=11 // pred_region
          _
        $region20: #{tpu_custom_call.1} parent=11 // pred_fallthru
          _
      $region12: #{tpu_custom_call.1} parent=5 // pred_fallthru
        _
      %p172 = scmp.lt.s32.totalorder %s21, 2
      // Predicated region
      $region21: #{tpu_custom_call.1} parent=5 // pred_check
        %p173 = pneg %p172
      $region22: #{tpu_custom_call.1} parent=5 // pred_check_branch
        %175 = sbr.rel (%p173) target = $region24
      $region23: #{tpu_custom_call.1} parent=5 // pred_region
        // Predicated region
        $region25: #{tpu_custom_call.1} parent=23 // pred_check
          %p176 = pneg %p41
        $region26: #{tpu_custom_call.1} parent=23 // pred_check_branch
          %178 = sbr.rel (%p176) target = $region28
        $region27: #{tpu_custom_call.1} parent=23 // pred_region
          %s179 = sand.u32 %s31, 1
          %s180 = scalar_lea.sflag [#allocation3], %s179
          %s181 = sand.u32 %s31, 1
          %s182 = smul.addr %s181, 8
          %s183 = scalar_lea.vmem [#allocation2], %s182
          %s185 = ssub.s32 128, 128
          %186 = vsyncadd %s180, %s185
          %s187 = smul.addr %s21, 128
          %s188 = scalar_lea.hbm %s0, %s187
          %s190 = sshll.u32 %s183, 4
          %s191 = int_to_ptr.vmem [resolvable:$true] %s190
          %193 = dma.hbm_to_vmem [thread:$0]  %s188, 128, %s191, %s180
        $region28: #{tpu_custom_call.1} parent=23 // pred_fallthru
          _
      $region24: #{tpu_custom_call.1} parent=5 // pred_fallthru
        _
      %p194 = scmp.le.s32.totalorder 1, %s21
      %p195 = scmp.lt.s32.totalorder %s21, 3
      %p196 = pnand %p194, %p195
      %p197 = pneg %p196
      // Predicated region
      $region29: #{tpu_custom_call.1} parent=5 // pred_check
        _
      $region30: #{tpu_custom_call.1} parent=5 // pred_check_branch
        %199 = sbr.rel (%p196) target = $region32
      $region31: #{tpu_custom_call.1} parent=5 // pred_region
        %s200 = ssub.s32 %s21, 1
        %s201 = sand.u32 %s34, 1
        %s202 = scalar_lea.sflag [#allocation3], %s201
        %s203 = sand.u32 %s34, 1
        %s204 = smul.addr %s203, 8
        %s205 = scalar_lea.vmem [#allocation2], %s204
        // Predicated region
        $region33: #{tpu_custom_call.1} parent=31 // pred_check
          %p206 = pneg %p47
        $region34: #{tpu_custom_call.1} parent=31 // pred_check_branch
          %208 = sbr.rel (%p206) target = $region36
        $region35: #{tpu_custom_call.1} parent=31 // pred_region
          %209 = dma.done %s202, 128
        $region36: #{tpu_custom_call.1} parent=31 // pred_fallthru
          _
        // Predicated region
        $region37: #{tpu_custom_call.1} parent=31 // pred_check
          %p210 = pneg %p68
        $region38: #{tpu_custom_call.1} parent=31 // pred_check_branch
          %212 = sbr.rel (%p210) target = $region40
        $region39: #{tpu_custom_call.1} parent=31 // pred_region
          %213 = dma.done [#allocation6], 6144
        $region40: #{tpu_custom_call.1} parent=31 // pred_fallthru
          _
        %s214 = sand.u32 %s34, 1
        %s215 = scalar_lea.sflag [#allocation3], %s214
        %s216 = sand.u32 %s34, 1
        %s217 = smul.addr %s216, 8
        %s218 = scalar_lea.vmem [#allocation2], %s217
        %p219 = pneg %p47
        %p220 = pneg %p44
        %p221 = pneg %p68
        %p222 = pneg %p65
        %p223 = pneg %p89
        %p224 = pneg %p86
        %p225 = pneg %p115
        %p226 = pneg %p112
        %s227 = sand.u32 %s102, 1
        %s228 = scalar_lea.sflag [#allocation4], %s227
        %s229 = sand.u32 %s102, 1
        %s230 = smul.addr %s229, 8
        %s231 = scalar_lea.vmem [#allocation7], %s230
        %p232 = pneg %p141
        %p233 = pneg %p138
        %s234 = sand.u32 %s128, 1
        %s235 = scalar_lea.sflag [#allocation9], %s234
        %s236 = sand.u32 %s128, 1
        %s237 = smul.addr %s236, 16
        %s238 = scalar_lea.vmem [#allocation8], %s237
        %v240 = vld [vmem:[%s205] sm:$0xff]
        %v241 = vld [vmem:[#allocation5] sm:$0xff]
        %v242 = vld [vmem:[#allocation5 + $0x8] sm:$0xff]
        %v243 = vld [vmem:[#allocation5 + $0x10] sm:$0xff]
        %v244 = vld [vmem:[#allocation5 + $0x18] sm:$0xff]
        %v245 = vld [vmem:[#allocation5 + $0x20] sm:$0xff]
        %v246 = vld [vmem:[#allocation5 + $0x28] sm:$0xff]
        %v247 = vld [vmem:[#allocation5 + $0x30] sm:$0xff]
        %v248 = vld [vmem:[#allocation5 + $0x38] sm:$0xff]
        %v249 = vld [vmem:[#allocation5 + $0x40] sm:$0xff]
        %v250 = vld [vmem:[#allocation5 + $0x48] sm:$0xff]
        %v251 = vld [vmem:[#allocation5 + $0x50] sm:$0xff]
        %v252 = vld [vmem:[#allocation5 + $0x58] sm:$0xff]
        %v253 = vld [vmem:[#allocation5 + $0x60] sm:$0xff]
        %v254 = vld [vmem:[#allocation5 + $0x68] sm:$0xff]
        %v255 = vld [vmem:[#allocation5 + $0x70] sm:$0xff]
        %v256 = vld [vmem:[#allocation5 + $0x78] sm:$0xff]
        %v257 = vld [vmem:[#allocation5 + $0x80] sm:$0xff]
        %v258 = vld [vmem:[#allocation5 + $0x88] sm:$0xff]
        %v259 = vld [vmem:[#allocation5 + $0x90] sm:$0xff]
        %v260 = vld [vmem:[#allocation5 + $0x98] sm:$0xff]
        %v261 = vld [vmem:[#allocation5 + $0xa0] sm:$0xff]
        %v262 = vld [vmem:[#allocation5 + $0xa8] sm:$0xff]
        %v263 = vld [vmem:[#allocation5 + $0xb0] sm:$0xff]
        %v264 = vld [vmem:[#allocation5 + $0xb8] sm:$0xff]
        %v265 = vld [vmem:[#allocation5 + $0xc0] sm:$0xff]
        %v266 = vld [vmem:[#allocation5 + $0xc8] sm:$0xff]
        %v267 = vld [vmem:[#allocation5 + $0xd0] sm:$0xff]
        %v268 = vld [vmem:[#allocation5 + $0xd8] sm:$0xff]
        %v269 = vld [vmem:[#allocation5 + $0xe0] sm:$0xff]
        %v270 = vld [vmem:[#allocation5 + $0xe8] sm:$0xff]
        %v271 = vld [vmem:[#allocation5 + $0xf0] sm:$0xff]
        %v272 = vld [vmem:[#allocation5 + $0xf8] sm:$0xff]
        %v273 = vld [vmem:[#allocation5 + $0x100] sm:$0xff]
        %v274 = vld [vmem:[#allocation5 + $0x108] sm:$0xff]
        %v275 = vld [vmem:[#allocation5 + $0x110] sm:$0xff]
        %v276 = vld [vmem:[#allocation5 + $0x118] sm:$0xff]
        %v277 = vld [vmem:[#allocation5 + $0x120] sm:$0xff]
        %v278 = vld [vmem:[#allocation5 + $0x128] sm:$0xff]
        %v279 = vld [vmem:[#allocation5 + $0x130] sm:$0xff]
        %v280 = vld [vmem:[#allocation5 + $0x138] sm:$0xff]
        %v281 = vld [vmem:[#allocation5 + $0x140] sm:$0xff]
        %v282 = vld [vmem:[#allocation5 + $0x148] sm:$0xff]
        %v283 = vld [vmem:[#allocation5 + $0x150] sm:$0xff]
        %v284 = vld [vmem:[#allocation5 + $0x158] sm:$0xff]
        %v285 = vld [vmem:[#allocation5 + $0x160] sm:$0xff]
        %v286 = vld [vmem:[#allocation5 + $0x168] sm:$0xff]
        %v287 = vld [vmem:[#allocation5 + $0x170] sm:$0xff]
        %v288 = vld [vmem:[#allocation5 + $0x178] sm:$0xff]
        %v289 = vld [vmem:[%s2] sm:$0x7]
        %v291 = vlaneseq
        %v292 = vshrl.u32 %v291, 7
        %v293 = vsub.s32 0, %v292
        %v294 = vrot.slane %v289, %v293
        %v295 = vlaneseq
        %v296 = vshrl.u32 %v295, 7
        %v297 = vsub.s32 1, %v296
        %v298 = vrot.slane %v289, %v297
        %v299 = vlaneseq
        %v300 = vshrl.u32 %v299, 7
        %v301 = vsub.s32 2, %v300
        %v302 = vrot.slane %v289, %v301
        %306 = vmatprep.subr.mxu0 %v242
        %307 = vmatpush1.msra.mxu0 %v241
        %308 = vmatprep.subr.mxu0 %v245
        %309 = vmatpush1.msra.mxu0 %v244
        %310 = vmatprep.subr.mxu0 %v248
        %311 = vmatpush1.msra.mxu0 %v247
        %312 = vmatprep.subr.mxu0 %v251
        %313 = vmatpush1.msra.mxu0 %v250
        %314 = vmatprep.subr.mxu0 %v254
        %315 = vmatpush1.msra.mxu0 %v253
        %316 = vmatprep.subr.mxu0 %v257
        %317 = vmatpush1.msra.mxu0 %v256
        %318 = vmatprep.subr.mxu0 %v260
        %319 = vmatpush1.msra.mxu0 %v259
        %320 = vmatprep.subr.mxu0 %v263
        %321 = vmatpush1.msra.mxu0 %v262
        %322 = vmatprep.subr.mxu0 %v266
        %323 = vmatpush1.msra.mxu0 %v265
        %324 = vmatprep.subr.mxu0 %v269
        %325 = vmatpush1.msra.mxu0 %v268
        %326 = vmatprep.subr.mxu0 %v272
        %327 = vmatpush1.msra.mxu0 %v271
        %328 = vmatprep.subr.mxu0 %v275
        %329 = vmatpush1.msra.mxu0 %v274
        %330 = vmatprep.subr.mxu0 %v278
        %331 = vmatpush1.msra.mxu0 %v277
        %332 = vmatprep.subr.mxu0 %v281
        %333 = vmatpush1.msra.mxu0 %v280
        %334 = vmatprep.subr.mxu0 %v284
        %335 = vmatpush1.msra.mxu0 %v283
        %336 = vmatprep.subr.mxu0 %v287
        %337 = vmatpush1.msra.mxu0 %v286
        %338 = vmatprep.subr.mxu0 0.0
        %339 = vmatpush1.msra.mxu0 0.0
        %340 = vmatprep.subr.mxu0 0.0
        %341 = vmatpush1.msra.mxu0 0.0
        %342 = vmatprep.subr.mxu0 0.0
        %343 = vmatpush1.msra.mxu0 0.0
        %344 = vmatprep.subr.mxu0 0.0
        %345 = vmatpush1.msra.mxu0 0.0
        %346 = vmatprep.subr.mxu0 0.0
        %347 = vmatpush1.msra.mxu0 0.0
        %348 = vmatprep.subr.mxu0 0.0
        %349 = vmatpush1.msra.mxu0 0.0
        %350 = vmatprep.subr.mxu0 0.0
        %351 = vmatpush1.msra.mxu0 0.0
        %352 = vmatprep.subr.mxu0 0.0
        %353 = vmatpush1.msra.mxu0 0.0
        %354 = vmatprep.subr.mxu0 0.0
        %355 = vmatpush1.msra.mxu0 0.0
        %356 = vmatprep.subr.mxu0 0.0
        %357 = vmatpush1.msra.mxu0 0.0
        %358 = vmatprep.subr.mxu0 0.0
        %359 = vmatpush1.msra.mxu0 0.0
        %360 = vmatprep.subr.mxu0 0.0
        %361 = vmatpush1.msra.mxu0 0.0
        %362 = vmatprep.subr.mxu0 0.0
        %363 = vmatpush1.msra.mxu0 0.0
        %364 = vmatprep.subr.mxu0 0.0
        %365 = vmatpush1.msra.mxu0 0.0
        %366 = vmatprep.subr.mxu0 0.0
        %367 = vmatpush1.msra.mxu0 0.0
        %368 = vmatprep.subr.mxu0 0.0
        %369 = vmatpush1.msra.mxu0 0.0
        %370 = vmatprep.mubr.f32.mxu0 0.0
        %371 = vmatmul.mubr.f32.gmra.mrb[0].mxu0 %v240
        %v372 = vpop.f32.mrb[0].mxu0
        %v373 = vadd.f32 %v294, %v372
        %v374 = vpop.f32.mrb[0].mxu0
        %v375 = vadd.f32 %v298, %v374
        %376 = vdwg.mxu0
        %377 = vmatprep.subr.mxu0 0.0
        %378 = vmatpush1.msra.mxu0 %v243
        %379 = vmatprep.subr.mxu0 0.0
        %380 = vmatpush1.msra.mxu0 %v246
        %381 = vmatprep.subr.mxu0 0.0
        %382 = vmatpush1.msra.mxu0 %v249
        %383 = vmatprep.subr.mxu0 0.0
        %384 = vmatpush1.msra.mxu0 %v252
        %385 = vmatprep.subr.mxu0 0.0
        %386 = vmatpush1.msra.mxu0 %v255
        %387 = vmatprep.subr.mxu0 0.0
        %388 = vmatpush1.msra.mxu0 %v258
        %389 = vmatprep.subr.mxu0 0.0
        %390 = vmatpush1.msra.mxu0 %v261
        %391 = vmatprep.subr.mxu0 0.0
        %392 = vmatpush1.msra.mxu0 %v264
        %393 = vmatprep.subr.mxu0 0.0
        %394 = vmatpush1.msra.mxu0 %v267
        %395 = vmatprep.subr.mxu0 0.0
        %396 = vmatpush1.msra.mxu0 %v270
        %397 = vmatprep.subr.mxu0 0.0
        %398 = vmatpush1.msra.mxu0 %v273
        %399 = vmatprep.subr.mxu0 0.0
        %400 = vmatpush1.msra.mxu0 %v276
        %401 = vmatprep.subr.mxu0 0.0
        %402 = vmatpush1.msra.mxu0 %v279
        %403 = vmatprep.subr.mxu0 0.0
        %404 = vmatpush1.msra.mxu0 %v282
        %405 = vmatprep.subr.mxu0 0.0
        %406 = vmatpush1.msra.mxu0 %v285
        %407 = vmatprep.subr.mxu0 0.0
        %408 = vmatpush1.msra.mxu0 %v288
        %409 = vmatprep.subr.mxu0 0.0
        %410 = vmatpush1.msra.mxu0 0.0
        %411 = vmatprep.subr.mxu0 0.0
        %412 = vmatpush1.msra.mxu0 0.0
        %413 = vmatprep.subr.mxu0 0.0
        %414 = vmatpush1.msra.mxu0 0.0
        %415 = vmatprep.subr.mxu0 0.0
        %416 = vmatpush1.msra.mxu0 0.0
        %417 = vmatprep.subr.mxu0 0.0
        %418 = vmatpush1.msra.mxu0 0.0
        %419 = vmatprep.subr.mxu0 0.0
        %420 = vmatpush1.msra.mxu0 0.0
        %421 = vmatprep.subr.mxu0 0.0
        %422 = vmatpush1.msra.mxu0 0.0
        %423 = vmatprep.subr.mxu0 0.0
        %424 = vmatpush1.msra.mxu0 0.0
        %425 = vmatprep.subr.mxu0 0.0
        %426 = vmatpush1.msra.mxu0 0.0
        %427 = vmatprep.subr.mxu0 0.0
        %428 = vmatpush1.msra.mxu0 0.0
        %429 = vmatprep.subr.mxu0 0.0
        %430 = vmatpush1.msra.mxu0 0.0
        %431 = vmatprep.subr.mxu0 0.0
        %432 = vmatpush1.msra.mxu0 0.0
        %433 = vmatprep.subr.mxu0 0.0
        %434 = vmatpush1.msra.mxu0 0.0
        %435 = vmatprep.subr.mxu0 0.0
        %436 = vmatpush1.msra.mxu0 0.0
        %437 = vmatprep.subr.mxu0 0.0
        %438 = vmatpush1.msra.mxu0 0.0
        %439 = vmatprep.subr.mxu0 0.0
        %440 = vmatpush1.msra.mxu0 0.0
        %441 = vmatprep.mubr.f32.mxu0 0.0
        %442 = vmatmul.mubr.f32.gmra.mrb[0].mxu0 %v240
        %v443 = vpop.f32.mrb[0].mxu0
        %v444 = vadd.f32 %v302, %v443
        %v445 = vpop.f32.mrb[0].mxu0
        %446 = vdwg.mxu0
        %v447 = vmul.f32 %v373, 0.17677669
        %v448 = vpack.c.bf16 %v447, %v447
        %v449 = vpack.c.bf16 %v375, %v375
        %v450 = vpack.c.bf16 %v444, %v444
        %vm451 = vcmask 261120
        %v453 = vsel %vm451, %v448, 0
        %v456 = vsel %vm451, %v449, 0
        %458 = vmatprep.subr.bf16.mxu0 0
        %459 = vmatpush1.bf16.xpose.msra.mxu0 %v456
        %460 = vmatprep.subr.bf16.mxu0 0
        %461 = vmatpush1.bf16.xpose.msra.mxu0 0
        %462 = vmatprep.subr.bf16.mxu0 0
        %463 = vmatpush1.bf16.xpose.msra.mxu0 0
        %464 = vmatprep.subr.bf16.mxu0 0
        %465 = vmatpush1.bf16.xpose.msra.mxu0 0
        %466 = vmatprep.subr.bf16.mxu0 0
        %467 = vmatpush1.bf16.xpose.msra.mxu0 0
        %468 = vmatprep.subr.bf16.mxu0 0
        %469 = vmatpush1.bf16.xpose.msra.mxu0 0
        %470 = vmatprep.subr.bf16.mxu0 0
        %471 = vmatpush1.bf16.xpose.msra.mxu0 0
        %472 = vmatprep.subr.bf16.mxu0 0
        %473 = vmatpush1.bf16.xpose.msra.mxu0 0
        %474 = vmatprep.subr.bf16.mxu0 0
        %475 = vmatpush1.bf16.xpose.msra.mxu0 0
        %476 = vmatprep.subr.bf16.mxu0 0
        %477 = vmatpush1.bf16.xpose.msra.mxu0 0
        %478 = vmatprep.subr.bf16.mxu0 0
        %479 = vmatpush1.bf16.xpose.msra.mxu0 0
        %480 = vmatprep.subr.bf16.mxu0 0
        %481 = vmatpush1.bf16.xpose.msra.mxu0 0
        %482 = vmatprep.subr.bf16.mxu0 0
        %483 = vmatpush1.bf16.xpose.msra.mxu0 0
        %484 = vmatprep.subr.bf16.mxu0 0
        %485 = vmatpush1.bf16.xpose.msra.mxu0 0
        %486 = vmatprep.subr.bf16.mxu0 0
        %487 = vmatpush1.bf16.xpose.msra.mxu0 0
        %488 = vmatprep.subr.bf16.mxu0 0
        %489 = vmatpush1.bf16.xpose.msra.mxu0 0
        %490 = vmatprep.mubr.bf16.mxu0 0
        %491 = vmatmul.mubr.bf16.gmra.mrb[0].mxu0 %v453
        %v492 = vpop.f32.mrb[0].mxu0
        %v493 = vadd.f32 0.0, %v492
        %v494 = vpop.f32.mrb[0].mxu0
        %v495 = vpop.f32.mrb[0].mxu0
        %v496 = vpop.f32.mrb[0].mxu0
        %497 = vdwg.mxu0
        %vm498 = vcmask 64512
        %v499 = vsel %vm498, %v493, -inf
        %500 = vmax.xlane.f32.xlu0 %v499
        %v501 = vpop.xlane.xlu0 %500
        %vm502 = vcmp.ge.f32.partialorder %v493, %v501
        %v503 = vsel %vm502, -1e+09, %v493
        %v504 = vsel %vm498, %v503, -inf
        %505 = vmax.xlane.f32.xlu0 %v504
        %v506 = vpop.xlane.xlu0 %505
        %vm507 = vcmp.ge.f32.partialorder %v503, %v506
        %v508 = vsel %vm507, -1e+09, %v503
        %v509 = vsel %vm498, %v508, -inf
        %510 = vmax.xlane.f32.xlu0 %v509
        %v511 = vpop.xlane.xlu0 %510
        %vm512 = vcmp.ge.f32.partialorder %v508, %v511
        %v513 = vsel %vm512, -1e+09, %v508
        %v514 = vsel %vm498, %v513, -inf
        %515 = vmax.xlane.f32.xlu0 %v514
        %v516 = vpop.xlane.xlu0 %515
        %vm517 = vcmp.ge.f32.partialorder %v493, %v516
        %v518 = vsel %vm517, %v493, -1e+09
        %v519 = vsub.f32 %v518, %v501
        %v520 = vmul.f32 %v519, 1.442695
        %v521 = vpow.pop %v520
        %v522 = vsel %vm498, %v521, 0.0
        %523 = vadd.xlane.f32.xlu0 %v522
        %v524 = vpop.xlane.xlu0 %523
        %v525 = vrcp.pop %v524
        %v526 = vmul.f32 %v521, %v525
        %v527 = vpack.c.bf16 %v526, %v526
        %v529 = vsel %vm498, %v527, 0
        %vm531 = vcmask 1043456
        %v533 = vsel %vm531, %v450, 0
        %535 = vmatprep.subr.bf16.mxu0 0
        %536 = vmatpush1.bf16.msra.mxu0 %v533
        %537 = vmatprep.subr.bf16.mxu0 0
        %538 = vmatpush1.bf16.msra.mxu0 0
        %539 = vmatprep.subr.bf16.mxu0 0
        %540 = vmatpush1.bf16.msra.mxu0 0
        %541 = vmatprep.subr.bf16.mxu0 0
        %542 = vmatpush1.bf16.msra.mxu0 0
        %543 = vmatprep.subr.bf16.mxu0 0
        %544 = vmatpush1.bf16.msra.mxu0 0
        %545 = vmatprep.subr.bf16.mxu0 0
        %546 = vmatpush1.bf16.msra.mxu0 0
        %547 = vmatprep.subr.bf16.mxu0 0
        %548 = vmatpush1.bf16.msra.mxu0 0
        %549 = vmatprep.subr.bf16.mxu0 0
        %550 = vmatpush1.bf16.msra.mxu0 0
        %551 = vmatprep.subr.bf16.mxu0 0
        %552 = vmatpush1.bf16.msra.mxu0 0
        %553 = vmatprep.subr.bf16.mxu0 0
        %554 = vmatpush1.bf16.msra.mxu0 0
        %555 = vmatprep.subr.bf16.mxu0 0
        %556 = vmatpush1.bf16.msra.mxu0 0
        %557 = vmatprep.subr.bf16.mxu0 0
        %558 = vmatpush1.bf16.msra.mxu0 0
        %559 = vmatprep.subr.bf16.mxu0 0
        %560 = vmatpush1.bf16.msra.mxu0 0
        %561 = vmatprep.subr.bf16.mxu0 0
        %562 = vmatpush1.bf16.msra.mxu0 0
        %563 = vmatprep.subr.bf16.mxu0 0
        %564 = vmatpush1.bf16.msra.mxu0 0
        %565 = vmatprep.subr.bf16.mxu0 0
        %566 = vmatpush1.bf16.msra.mxu0 0
        %567 = vmatprep.mubr.bf16.mxu0 0
        %568 = vmatmul.mubr.bf16.gmra.mrb[0].mxu0 %v529
        %v569 = vpop.f32.mrb[0].mxu0
        %v570 = vadd.f32 0.0, %v569
        %v571 = vpop.f32.mrb[0].mxu0
        %v572 = vpop.f32.mrb[0].mxu0
        %v573 = vpop.f32.mrb[0].mxu0
        %574 = vdwg.mxu0
        %vm575 = vcmask 60416
        %576 = vst.msk [vmem:[%s238] sm:$0xf] %vm575, %v527
        %578 = vrot.lane.b32.xlu0 %v448, 96
        %v579 = vpop.permute.xlu0 %578
        %581 = vrot.lane.b32.xlu0 %v449, 96
        %v582 = vpop.permute.xlu0 %581
        %v584 = vsel %vm451, %v579, 0
        %v587 = vsel %vm451, %v582, 0
        %589 = vmatprep.subr.bf16.mxu0 0
        %590 = vmatpush1.bf16.xpose.msra.mxu0 %v587
        %591 = vmatprep.subr.bf16.mxu0 0
        %592 = vmatpush1.bf16.xpose.msra.mxu0 0
        %593 = vmatprep.subr.bf16.mxu0 0
        %594 = vmatpush1.bf16.xpose.msra.mxu0 0
        %595 = vmatprep.subr.bf16.mxu0 0
        %596 = vmatpush1.bf16.xpose.msra.mxu0 0
        %597 = vmatprep.subr.bf16.mxu0 0
        %598 = vmatpush1.bf16.xpose.msra.mxu0 0
        %599 = vmatprep.subr.bf16.mxu0 0
        %600 = vmatpush1.bf16.xpose.msra.mxu0 0
        %601 = vmatprep.subr.bf16.mxu0 0
        %602 = vmatpush1.bf16.xpose.msra.mxu0 0
        %603 = vmatprep.subr.bf16.mxu0 0
        %604 = vmatpush1.bf16.xpose.msra.mxu0 0
        %605 = vmatprep.subr.bf16.mxu0 0
        %606 = vmatpush1.bf16.xpose.msra.mxu0 0
        %607 = vmatprep.subr.bf16.mxu0 0
        %608 = vmatpush1.bf16.xpose.msra.mxu0 0
        %609 = vmatprep.subr.bf16.mxu0 0
        %610 = vmatpush1.bf16.xpose.msra.mxu0 0
        %611 = vmatprep.subr.bf16.mxu0 0
        %612 = vmatpush1.bf16.xpose.msra.mxu0 0
        %613 = vmatprep.subr.bf16.mxu0 0
        %614 = vmatpush1.bf16.xpose.msra.mxu0 0
        %615 = vmatprep.subr.bf16.mxu0 0
        %616 = vmatpush1.bf16.xpose.msra.mxu0 0
        %617 = vmatprep.subr.bf16.mxu0 0
        %618 = vmatpush1.bf16.xpose.msra.mxu0 0
        %619 = vmatprep.subr.bf16.mxu0 0
        %620 = vmatpush1.bf16.xpose.msra.mxu0 0
        %621 = vmatprep.mubr.bf16.mxu0 0
        %622 = vmatmul.mubr.bf16.gmra.mrb[0].mxu0 %v584
        %v623 = vpop.f32.mrb[0].mxu0
        %v624 = vadd.f32 0.0, %v623
        %v625 = vpop.f32.mrb[0].mxu0
        %v626 = vpop.f32.mrb[0].mxu0
        %v627 = vpop.f32.mrb[0].mxu0
        %628 = vdwg.mxu0
        %v629 = vsel %vm498, %v624, -inf
        %630 = vmax.xlane.f32.xlu0 %v629
        %v631 = vpop.xlane.xlu0 %630
        %vm632 = vcmp.ge.f32.partialorder %v624, %v631
        %v633 = vsel %vm632, -1e+09, %v624
        %v634 = vsel %vm498, %v633, -inf
        %635 = vmax.xlane.f32.xlu0 %v634
        %v636 = vpop.xlane.xlu0 %635
        %vm637 = vcmp.ge.f32.partialorder %v633, %v636
        %v638 = vsel %vm637, -1e+09, %v633
        %v639 = vsel %vm498, %v638, -inf
        %640 = vmax.xlane.f32.xlu0 %v639
        %v641 = vpop.xlane.xlu0 %640
        %vm642 = vcmp.ge.f32.partialorder %v638, %v641
        %v643 = vsel %vm642, -1e+09, %v638
        %v644 = vsel %vm498, %v643, -inf
        %645 = vmax.xlane.f32.xlu0 %v644
        %v646 = vpop.xlane.xlu0 %645
        %vm647 = vcmp.ge.f32.partialorder %v624, %v646
        %v648 = vsel %vm647, %v624, -1e+09
        %v649 = vsub.f32 %v648, %v631
        %v650 = vmul.f32 %v649, 1.442695
        %v651 = vpow.pop %v650
        %v652 = vsel %vm498, %v651, 0.0
        %653 = vadd.xlane.f32.xlu0 %v652
        %v654 = vpop.xlane.xlu0 %653
        %v655 = vrcp.pop %v654
        %v656 = vmul.f32 %v651, %v655
        %v657 = vpack.c.bf16 %v656, %v656
        %659 = vrot.lane.b32.xlu0 %v450, 96
        %v660 = vpop.permute.xlu0 %659
        %v662 = vsel %vm498, %v657, 0
        %v665 = vsel %vm531, %v660, 0
        %667 = vmatprep.subr.bf16.mxu0 0
        %668 = vmatpush1.bf16.msra.mxu0 %v665
        %669 = vmatprep.subr.bf16.mxu0 0
        %670 = vmatpush1.bf16.msra.mxu0 0
        %671 = vmatprep.subr.bf16.mxu0 0
        %672 = vmatpush1.bf16.msra.mxu0 0
        %673 = vmatprep.subr.bf16.mxu0 0
        %674 = vmatpush1.bf16.msra.mxu0 0
        %675 = vmatprep.subr.bf16.mxu0 0
        %676 = vmatpush1.bf16.msra.mxu0 0
        %677 = vmatprep.subr.bf16.mxu0 0
        %678 = vmatpush1.bf16.msra.mxu0 0
        %679 = vmatprep.subr.bf16.mxu0 0
        %680 = vmatpush1.bf16.msra.mxu0 0
        %681 = vmatprep.subr.bf16.mxu0 0
        %682 = vmatpush1.bf16.msra.mxu0 0
        %683 = vmatprep.subr.bf16.mxu0 0
        %684 = vmatpush1.bf16.msra.mxu0 0
        %685 = vmatprep.subr.bf16.mxu0 0
        %686 = vmatpush1.bf16.msra.mxu0 0
        %687 = vmatprep.subr.bf16.mxu0 0
        %688 = vmatpush1.bf16.msra.mxu0 0
        %689 = vmatprep.subr.bf16.mxu0 0
        %690 = vmatpush1.bf16.msra.mxu0 0
        %691 = vmatprep.subr.bf16.mxu0 0
        %692 = vmatpush1.bf16.msra.mxu0 0
        %693 = vmatprep.subr.bf16.mxu0 0
        %694 = vmatpush1.bf16.msra.mxu0 0
        %695 = vmatprep.subr.bf16.mxu0 0
        %696 = vmatpush1.bf16.msra.mxu0 0
        %697 = vmatprep.subr.bf16.mxu0 0
        %698 = vmatpush1.bf16.msra.mxu0 0
        %699 = vmatprep.mubr.bf16.mxu0 0
        %700 = vmatmul.mubr.bf16.gmra.mrb[0].mxu0 %v662
        %v701 = vpop.f32.mrb[0].mxu0
        %v702 = vadd.f32 0.0, %v701
        %v703 = vpop.f32.mrb[0].mxu0
        %v704 = vpop.f32.mrb[0].mxu0
        %v705 = vpop.f32.mrb[0].mxu0
        %706 = vdwg.mxu0
        %s707 = scalar_lea.vmem %s238, 4 [#allocation8]
        %708 = vst.msk [vmem:[%s707] sm:$0xf] %vm575, %v657
        %709 = vrot.lane.b32.xlu0 %v448, 64
        %v710 = vpop.permute.xlu0 %709
        %711 = vrot.lane.b32.xlu0 %v449, 64
        %v712 = vpop.permute.xlu0 %711
        %v714 = vsel %vm451, %v710, 0
        %v717 = vsel %vm451, %v712, 0
        %719 = vmatprep.subr.bf16.mxu0 0
        %720 = vmatpush1.bf16.xpose.msra.mxu0 %v717
        %721 = vmatprep.subr.bf16.mxu0 0
        %722 = vmatpush1.bf16.xpose.msra.mxu0 0
        %723 = vmatprep.subr.bf16.mxu0 0
        %724 = vmatpush1.bf16.xpose.msra.mxu0 0
        %725 = vmatprep.subr.bf16.mxu0 0
        %726 = vmatpush1.bf16.xpose.msra.mxu0 0
        %727 = vmatprep.subr.bf16.mxu0 0
        %728 = vmatpush1.bf16.xpose.msra.mxu0 0
        %729 = vmatprep.subr.bf16.mxu0 0
        %730 = vmatpush1.bf16.xpose.msra.mxu0 0
        %731 = vmatprep.subr.bf16.mxu0 0
        %732 = vmatpush1.bf16.xpose.msra.mxu0 0
        %733 = vmatprep.subr.bf16.mxu0 0
        %734 = vmatpush1.bf16.xpose.msra.mxu0 0
        %735 = vmatprep.subr.bf16.mxu0 0
        %736 = vmatpush1.bf16.xpose.msra.mxu0 0
        %737 = vmatprep.subr.bf16.mxu0 0
        %738 = vmatpush1.bf16.xpose.msra.mxu0 0
        %739 = vmatprep.subr.bf16.mxu0 0
        %740 = vmatpush1.bf16.xpose.msra.mxu0 0
        %741 = vmatprep.subr.bf16.mxu0 0
        %742 = vmatpush1.bf16.xpose.msra.mxu0 0
        %743 = vmatprep.subr.bf16.mxu0 0
        %744 = vmatpush1.bf16.xpose.msra.mxu0 0
        %745 = vmatprep.subr.bf16.mxu0 0
        %746 = vmatpush1.bf16.xpose.msra.mxu0 0
        %747 = vmatprep.subr.bf16.mxu0 0
        %748 = vmatpush1.bf16.xpose.msra.mxu0 0
        %749 = vmatprep.subr.bf16.mxu0 0
        %750 = vmatpush1.bf16.xpose.msra.mxu0 0
        %751 = vmatprep.mubr.bf16.mxu0 0
        %752 = vmatmul.mubr.bf16.gmra.mrb[0].mxu0 %v714
        %v753 = vpop.f32.mrb[0].mxu0
        %v754 = vadd.f32 0.0, %v753
        %v755 = vpop.f32.mrb[0].mxu0
        %v756 = vpop.f32.mrb[0].mxu0
        %v757 = vpop.f32.mrb[0].mxu0
        %758 = vdwg.mxu0
        %v759 = vsel %vm498, %v754, -inf
        %760 = vmax.xlane.f32.xlu0 %v759
        %v761 = vpop.xlane.xlu0 %760
        %vm762 = vcmp.ge.f32.partialorder %v754, %v761
        %v763 = vsel %vm762, -1e+09, %v754
        %v764 = vsel %vm498, %v763, -inf
        %765 = vmax.xlane.f32.xlu0 %v764
        %v766 = vpop.xlane.xlu0 %765
        %vm767 = vcmp.ge.f32.partialorder %v763, %v766
        %v768 = vsel %vm767, -1e+09, %v763
        %v769 = vsel %vm498, %v768, -inf
        %770 = vmax.xlane.f32.xlu0 %v769
        %v771 = vpop.xlane.xlu0 %770
        %vm772 = vcmp.ge.f32.partialorder %v768, %v771
        %v773 = vsel %vm772, -1e+09, %v768
        %v774 = vsel %vm498, %v773, -inf
        %775 = vmax.xlane.f32.xlu0 %v774
        %v776 = vpop.xlane.xlu0 %775
        %vm777 = vcmp.ge.f32.partialorder %v754, %v776
        %v778 = vsel %vm777, %v754, -1e+09
        %v779 = vsub.f32 %v778, %v761
        %v780 = vmul.f32 %v779, 1.442695
        %v781 = vpow.pop %v780
        %v782 = vsel %vm498, %v781, 0.0
        %783 = vadd.xlane.f32.xlu0 %v782
        %v784 = vpop.xlane.xlu0 %783
        %v785 = vrcp.pop %v784
        %v786 = vmul.f32 %v781, %v785
        %v787 = vpack.c.bf16 %v786, %v786
        %788 = vrot.lane.b32.xlu0 %v450, 64
        %v789 = vpop.permute.xlu0 %788
        %v791 = vsel %vm498, %v787, 0
        %v794 = vsel %vm531, %v789, 0
        %796 = vmatprep.subr.bf16.mxu0 0
        %797 = vmatpush1.bf16.msra.mxu0 %v794
        %798 = vmatprep.subr.bf16.mxu0 0
        %799 = vmatpush1.bf16.msra.mxu0 0
        %800 = vmatprep.subr.bf16.mxu0 0
        %801 = vmatpush1.bf16.msra.mxu0 0
        %802 = vmatprep.subr.bf16.mxu0 0
        %803 = vmatpush1.bf16.msra.mxu0 0
        %804 = vmatprep.subr.bf16.mxu0 0
        %805 = vmatpush1.bf16.msra.mxu0 0
        %806 = vmatprep.subr.bf16.mxu0 0
        %807 = vmatpush1.bf16.msra.mxu0 0
        %808 = vmatprep.subr.bf16.mxu0 0
        %809 = vmatpush1.bf16.msra.mxu0 0
        %810 = vmatprep.subr.bf16.mxu0 0
        %811 = vmatpush1.bf16.msra.mxu0 0
        %812 = vmatprep.subr.bf16.mxu0 0
        %813 = vmatpush1.bf16.msra.mxu0 0
        %814 = vmatprep.subr.bf16.mxu0 0
        %815 = vmatpush1.bf16.msra.mxu0 0
        %816 = vmatprep.subr.bf16.mxu0 0
        %817 = vmatpush1.bf16.msra.mxu0 0
        %818 = vmatprep.subr.bf16.mxu0 0
        %819 = vmatpush1.bf16.msra.mxu0 0
        %820 = vmatprep.subr.bf16.mxu0 0
        %821 = vmatpush1.bf16.msra.mxu0 0
        %822 = vmatprep.subr.bf16.mxu0 0
        %823 = vmatpush1.bf16.msra.mxu0 0
        %824 = vmatprep.subr.bf16.mxu0 0
        %825 = vmatpush1.bf16.msra.mxu0 0
        %826 = vmatprep.subr.bf16.mxu0 0
        %827 = vmatpush1.bf16.msra.mxu0 0
        %828 = vmatprep.mubr.bf16.mxu0 0
        %829 = vmatmul.mubr.bf16.gmra.mrb[0].mxu0 %v791
        %v830 = vpop.f32.mrb[0].mxu0
        %v831 = vadd.f32 0.0, %v830
        %v832 = vpop.f32.mrb[0].mxu0
        %v833 = vpop.f32.mrb[0].mxu0
        %v834 = vpop.f32.mrb[0].mxu0
        %835 = vdwg.mxu0
        %s836 = scalar_lea.vmem %s238, 8 [#allocation8]
        %837 = vst.msk [vmem:[%s836] sm:$0xf] %vm575, %v787
        %838 = vrot.lane.b32.xlu0 %v448, 32
        %v839 = vpop.permute.xlu0 %838
        %840 = vrot.lane.b32.xlu0 %v449, 32
        %v841 = vpop.permute.xlu0 %840
        %v843 = vsel %vm451, %v839, 0
        %v846 = vsel %vm451, %v841, 0
        %848 = vmatprep.subr.bf16.mxu0 0
        %849 = vmatpush1.bf16.xpose.msra.mxu0 %v846
        %850 = vmatprep.subr.bf16.mxu0 0
        %851 = vmatpush1.bf16.xpose.msra.mxu0 0
        %852 = vmatprep.subr.bf16.mxu0 0
        %853 = vmatpush1.bf16.xpose.msra.mxu0 0
        %854 = vmatprep.subr.bf16.mxu0 0
        %855 = vmatpush1.bf16.xpose.msra.mxu0 0
        %856 = vmatprep.subr.bf16.mxu0 0
        %857 = vmatpush1.bf16.xpose.msra.mxu0 0
        %858 = vmatprep.subr.bf16.mxu0 0
        %859 = vmatpush1.bf16.xpose.msra.mxu0 0
        %860 = vmatprep.subr.bf16.mxu0 0
        %861 = vmatpush1.bf16.xpose.msra.mxu0 0
        %862 = vmatprep.subr.bf16.mxu0 0
        %863 = vmatpush1.bf16.xpose.msra.mxu0 0
        %864 = vmatprep.subr.bf16.mxu0 0
        %865 = vmatpush1.bf16.xpose.msra.mxu0 0
        %866 = vmatprep.subr.bf16.mxu0 0
        %867 = vmatpush1.bf16.xpose.msra.mxu0 0
        %868 = vmatprep.subr.bf16.mxu0 0
        %869 = vmatpush1.bf16.xpose.msra.mxu0 0
        %870 = vmatprep.subr.bf16.mxu0 0
        %871 = vmatpush1.bf16.xpose.msra.mxu0 0
        %872 = vmatprep.subr.bf16.mxu0 0
        %873 = vmatpush1.bf16.xpose.msra.mxu0 0
        %874 = vmatprep.subr.bf16.mxu0 0
        %875 = vmatpush1.bf16.xpose.msra.mxu0 0
        %876 = vmatprep.subr.bf16.mxu0 0
        %877 = vmatpush1.bf16.xpose.msra.mxu0 0
        %878 = vmatprep.subr.bf16.mxu0 0
        %879 = vmatpush1.bf16.xpose.msra.mxu0 0
        %880 = vmatprep.mubr.bf16.mxu0 0
        %881 = vmatmul.mubr.bf16.gmra.mrb[0].mxu0 %v843
        %v882 = vpop.f32.mrb[0].mxu0
        %v883 = vadd.f32 0.0, %v882
        %v884 = vpop.f32.mrb[0].mxu0
        %v885 = vpop.f32.mrb[0].mxu0
        %v886 = vpop.f32.mrb[0].mxu0
        %887 = vdwg.mxu0
        %v888 = vsel %vm498, %v883, -inf
        %889 = vmax.xlane.f32.xlu0 %v888
        %v890 = vpop.xlane.xlu0 %889
        %vm891 = vcmp.ge.f32.partialorder %v883, %v890
        %v892 = vsel %vm891, -1e+09, %v883
        %v893 = vsel %vm498, %v892, -inf
        %894 = vmax.xlane.f32.xlu0 %v893
        %v895 = vpop.xlane.xlu0 %894
        %vm896 = vcmp.ge.f32.partialorder %v892, %v895
        %v897 = vsel %vm896, -1e+09, %v892
        %v898 = vsel %vm498, %v897, -inf
        %899 = vmax.xlane.f32.xlu0 %v898
        %v900 = vpop.xlane.xlu0 %899
        %vm901 = vcmp.ge.f32.partialorder %v897, %v900
        %v902 = vsel %vm901, -1e+09, %v897
        %v903 = vsel %vm498, %v902, -inf
        %904 = vmax.xlane.f32.xlu0 %v903
        %v905 = vpop.xlane.xlu0 %904
        %vm906 = vcmp.ge.f32.partialorder %v883, %v905
        %v907 = vsel %vm906, %v883, -1e+09
        %v908 = vsub.f32 %v907, %v890
        %v909 = vmul.f32 %v908, 1.442695
        %v910 = vpow.pop %v909
        %v911 = vsel %vm498, %v910, 0.0
        %912 = vadd.xlane.f32.xlu0 %v911
        %v913 = vpop.xlane.xlu0 %912
        %v914 = vrcp.pop %v913
        %v915 = vmul.f32 %v910, %v914
        %v916 = vpack.c.bf16 %v915, %v915
        %917 = vrot.lane.b32.xlu0 %v450, 32
        %v918 = vpop.permute.xlu0 %917
        %v920 = vsel %vm498, %v916, 0
        %v923 = vsel %vm531, %v918, 0
        %925 = vmatprep.subr.bf16.mxu0 0
        %926 = vmatpush1.bf16.msra.mxu0 %v923
        %927 = vmatprep.subr.bf16.mxu0 0
        %928 = vmatpush1.bf16.msra.mxu0 0
        %929 = vmatprep.subr.bf16.mxu0 0
        %930 = vmatpush1.bf16.msra.mxu0 0
        %931 = vmatprep.subr.bf16.mxu0 0
        %932 = vmatpush1.bf16.msra.mxu0 0
        %933 = vmatprep.subr.bf16.mxu0 0
        %934 = vmatpush1.bf16.msra.mxu0 0
        %935 = vmatprep.subr.bf16.mxu0 0
        %936 = vmatpush1.bf16.msra.mxu0 0
        %937 = vmatprep.subr.bf16.mxu0 0
        %938 = vmatpush1.bf16.msra.mxu0 0
        %939 = vmatprep.subr.bf16.mxu0 0
        %940 = vmatpush1.bf16.msra.mxu0 0
        %941 = vmatprep.subr.bf16.mxu0 0
        %942 = vmatpush1.bf16.msra.mxu0 0
        %943 = vmatprep.subr.bf16.mxu0 0
        %944 = vmatpush1.bf16.msra.mxu0 0
        %945 = vmatprep.subr.bf16.mxu0 0
        %946 = vmatpush1.bf16.msra.mxu0 0
        %947 = vmatprep.subr.bf16.mxu0 0
        %948 = vmatpush1.bf16.msra.mxu0 0
        %949 = vmatprep.subr.bf16.mxu0 0
        %950 = vmatpush1.bf16.msra.mxu0 0
        %951 = vmatprep.subr.bf16.mxu0 0
        %952 = vmatpush1.bf16.msra.mxu0 0
        %953 = vmatprep.subr.bf16.mxu0 0
        %954 = vmatpush1.bf16.msra.mxu0 0
        %955 = vmatprep.subr.bf16.mxu0 0
        %956 = vmatpush1.bf16.msra.mxu0 0
        %957 = vmatprep.mubr.bf16.mxu0 0
        %958 = vmatmul.mubr.bf16.gmra.mrb[0].mxu0 %v920
        %v959 = vpop.f32.mrb[0].mxu0
        %v960 = vadd.f32 0.0, %v959
        %v961 = vpop.f32.mrb[0].mxu0
        %v962 = vpop.f32.mrb[0].mxu0
        %v963 = vpop.f32.mrb[0].mxu0
        %964 = vdwg.mxu0
        %s965 = scalar_lea.vmem %s238, 12 [#allocation8]
        %966 = vst.msk [vmem:[%s965] sm:$0xf] %vm575, %v916
        %968 = vrot.lane.b32.xlu0 %v702, 32
        %v969 = vpop.permute.xlu0 %968
        %972 = vrot.lane.b32.xlu0 %v831, 64
        %v973 = vpop.permute.xlu0 %972
        %976 = vrot.lane.b32.xlu0 %v960, 96
        %v977 = vpop.permute.xlu0 %976
        %v979 = vsel %vm451, %v570, %v969
        %vm980 = vcmask 523264
        %v981 = vsel %vm980, %v979, %v973
        %vm982 = vcmask 785408
        %v983 = vsel %vm982, %v981, %v977
        %984 = vst [vmem:[%s231] sm:$0xff] %v983
        %s985 = sand.u32 %s102, 1
        %s986 = scalar_lea.sflag [#allocation4], %s985
        %s987 = sand.u32 %s102, 1
        %s988 = smul.addr %s987, 8
        %s989 = scalar_lea.vmem [#allocation7], %s988
        %s990 = sand.u32 %s128, 1
        %s991 = scalar_lea.sflag [#allocation9], %s990
        %s992 = sand.u32 %s128, 1
        %s993 = smul.addr %s992, 16
        %s994 = scalar_lea.vmem [#allocation8], %s993
        // Predicated region
        $region41: #{tpu_custom_call.1} parent=31 // pred_check
          %p995 = pneg %p112
        $region42: #{tpu_custom_call.1} parent=31 // pred_check_branch
          %997 = sbr.rel (%p995) target = $region44
        $region43: #{tpu_custom_call.1} parent=31 // pred_region
          %s999 = ssub.s32 128, 128
          %1000 = vsyncadd %s986, %s999
          %s1001 = smul.addr %s26, 128
          %s1002 = scalar_lea.hbm %s3, %s1001
          %s1004 = sshll.u32 %s989, 4
          %s1005 = int_to_ptr.vmem [resolvable:$true] %s1004
          %1007 = dma.vmem_to_hbm [thread:$0]  %s1005, 128, %s1002, %s986
        $region44: #{tpu_custom_call.1} parent=31 // pred_fallthru
          _
        // Predicated region
        $region45: #{tpu_custom_call.1} parent=31 // pred_check
          %p1008 = pneg %p138
        $region46: #{tpu_custom_call.1} parent=31 // pred_check_branch
          %1010 = sbr.rel (%p1008) target = $region48
        $region47: #{tpu_custom_call.1} parent=31 // pred_region
          %s1012 = ssub.s32 256, 256
          %1013 = vsyncadd %s991, %s1012
          %s1014 = smul.addr %s26, 4
          %s1015 = smul.addr %s1014, 64
          %s1016 = scalar_lea.hbm %s4, %s1015
          %s1017 = sshll.u32 %s994, 4
          %s1018 = int_to_ptr.vmem [resolvable:$true] %s1017
          %1023 = dma.vmem_to_hbm [thread:$0]  %s1018, 256, %s1016, %s991, 64, 64, 4
        $region48: #{tpu_custom_call.1} parent=31 // pred_fallthru
          _
      $region32: #{tpu_custom_call.1} parent=5 // pred_fallthru
        _
      %p1024 = scmp.le.s32.totalorder 2, %s21
      // Predicated region
      $region49: #{tpu_custom_call.1} parent=5 // pred_check
        %p1025 = pneg %p1024
      $region50: #{tpu_custom_call.1} parent=5 // pred_check_branch
        %1027 = sbr.rel (%p1025) target = $region52
      $region51: #{tpu_custom_call.1} parent=5 // pred_region
        %s1028 = ssub.s32 %s21, 2
        // Predicated region
        $region53: #{tpu_custom_call.1} parent=51 // pred_check
          %p1029 = pneg %p118
        $region54: #{tpu_custom_call.1} parent=51 // pred_check_branch
          %1031 = sbr.rel (%p1029) target = $region56
        $region55: #{tpu_custom_call.1} parent=51 // pred_region
          %s1032 = sand.u32 %s103, 1
          %s1033 = scalar_lea.sflag [#allocation4], %s1032
          %s1034 = sand.u32 %s103, 1
          %s1035 = smul.addr %s1034, 8
          %s1036 = scalar_lea.vmem [#allocation7], %s1035
          %1037 = dma.done %s1033, 128
        $region56: #{tpu_custom_call.1} parent=51 // pred_fallthru
          _
        // Predicated region
        $region57: #{tpu_custom_call.1} parent=51 // pred_check
          %p1038 = pneg %p144
        $region58: #{tpu_custom_call.1} parent=51 // pred_check_branch
          %1040 = sbr.rel (%p1038) target = $region60
        $region59: #{tpu_custom_call.1} parent=51 // pred_region
          %s1041 = sand.u32 %s129, 1
          %s1042 = scalar_lea.sflag [#allocation9], %s1041
          %s1043 = sand.u32 %s129, 1
          %s1044 = smul.addr %s1043, 16
          %s1045 = scalar_lea.vmem [#allocation8], %s1044
          %1046 = dma.done %s1042, 256
        $region60: #{tpu_custom_call.1} parent=51 // pred_fallthru
          _
      $region52: #{tpu_custom_call.1} parent=5 // pred_fallthru
        _
    $region6: #{tpu_custom_call.1} parent=1 // loop_footer
      %s25 = sadd.s32 1, %s21
    $region7: #{tpu_custom_call.1} parent=1 // loop_footer_branch
      %20 = sbr.rel target = $region3
    $region8: #{tpu_custom_call.1} parent=1 // loop_exit
      _
    %1047 = vsyncpa [#allocation3], 1
    %s1048 = scalar_lea.sflag [#allocation3], 1
    %1049 = vsyncpa %s1048, 1
    %1050 = vsyncpa [#allocation6], 1
    %1051 = vsyncpa [#allocation4], 1
    %s1052 = scalar_lea.sflag [#allocation4], 1
    %1053 = vsyncpa %s1052, 1
    %1054 = vsyncpa [#allocation9], 1
    %s1055 = scalar_lea.sflag [#allocation9], 1
    %1056 = vsyncpa %s1055, 1

</llo_original>
